<compile_context>
chip_gen: v6e
topology: v6e:2x2x1
jax: 0.10.0
libtpu: 0.0.40
codegen_flags: <defaults>
</compile_context>

<pallas_src>
import functools

import numpy as np
import jax
import jax.numpy as jnp
from jax.experimental import pallas as pl
from jax.experimental.pallas import tpu as pltpu


def _gru_forward_kernel(x_ref,      # (T*B, V)   time-major, flattened input
                        wi_ref,     # (V, 3*HP)  input->gate weights  [r | z | n], lane-padded
                        wh_ref,     # (HP, 3*HP) hidden->gate weights [r | z | n], lane-padded
                        bi_ref,     # (1, 3*HP)  input biases  (lane-padded)
                        bh_ref,     # (1, 3*HP)  hidden biases (lane-padded)
                        linw_ref,   # (HP, V)    linear1 weight (pre-transposed, row-padded)
                        linb_ref,   # (1, V)     linear1 bias
                        hww_ref,    # (HW,)      highway weights (SMEM scalars)
                        hwb_ref,    # (1,)       highway bias    (SMEM scalar)
                        out_ref,    # (B, V)     output
                        *, batch, seq, hw, hp, apply_output):
    B, T, HP = batch, seq, hp
    H3P = 3 * HP

    x_all = x_ref[...]                                            # (T*B, V)

    # ---- Hoisted input projections: one MXU matmul for all timesteps -------
    # gi[t*B + b, :] = x[b, t, :] @ Wi_packed + b_i   (gate order [r | z | n])
    gi = jnp.dot(x_all, wi_ref[...],
                 preferred_element_type=jnp.float32) + bi_ref[...]  # (T*B, 3*HP)

    # Loop-invariant operands, materialized / broadcast once.
    wh = wh_ref[...]                                              # (HP, 3*HP)
    bh = jnp.broadcast_to(bh_ref[...], (B, H3P))                  # (B, 3*HP)

    # ---- GRU recurrence (PyTorch nn.GRU semantics), h carried in vregs -----
    #   r = sigmoid(gi_r + gh_r)
    #   z = sigmoid(gi_z + gh_z)
    #   n = tanh  (gi_n + r * gh_n)
    #   h = (1 - z) * n + z * h   ==  n + z * (h - n)
    # Padding lanes (H..HP-1 of each gate) have zero weights/biases, so h's
    # padding lanes remain exactly 0 across all steps.
    h = jnp.zeros((B, HP), jnp.float32)
    for t in range(T):                                            # static unroll
        gi_t = gi[t * B:(t + 1) * B, :]                           # contiguous static slice
        gh = jnp.dot(h, wh, preferred_element_type=jnp.float32) + bh
        # Fused sigmoid over the packed [r | z] half (lane-aligned slices).
        s = jax.nn.sigmoid(gi_t[:, :2 * HP] + gh[:, :2 * HP])
        r = s[:, :HP]
        z = s[:, HP:]
        n = jnp.tanh(gi_t[:, 2 * HP:] + r * gh[:, 2 * HP:])
        h = n + z * (h - n)

    # ---- Linear head (dropout is identity in eval mode) ---------------------
    out = jnp.dot(h, linw_ref[...],
                  preferred_element_type=jnp.float32) + linb_ref[...]   # (B, V)

    # ---- Highway: out[b, v] += sum_k hw_w[k] * x[b, T-HW+k, v] + hw_b -------
    # Unrolled scalar x vector FMAs; weights are SMEM scalars -> pure VPU work,
    # independent of the recurrence (free filler).
    out = out + hwb_ref[0]
    for k in range(hw):
        xk = x_all[(T - hw + k) * B:(T - hw + k + 1) * B, :]      # (B, V) static slice
        out = out + hww_ref[k] * xk

    if apply_output == "sigmoid":
        out = jax.nn.sigmoid(out)
    elif apply_output == "tanh":
        out = jnp.tanh(out)

    out_ref[...] = out.astype(out_ref.dtype)


def pack_params(w_ih, w_hh, b_ih, b_hh, lin_w, lin_b, hw_w, hw_b):
    """Repack PyTorch-layout GRU/linear/highway params for the kernel.

    Gates are concatenated [r | z | n] with each gate padded to HP (multiple of
    128) lanes so in-kernel gate slices are lane-tile aligned.
    """
    H = w_hh.shape[1]
    V = w_ih.shape[1]
    HP = 128 * ((H + 127) // 128)                  # lane-aligned per-gate width

    wi = jnp.zeros((V, 3 * HP), jnp.float32)
    wh = jnp.zeros((HP, 3 * HP), jnp.float32)
    bi = jnp.zeros((1, 3 * HP), jnp.float32)
    bh = jnp.zeros((1, 3 * HP), jnp.float32)
    for g in range(3):                             # gate order r, z, n
        wi = wi.at[:, g * HP:g * HP + H].set(w_ih[g * H:(g + 1) * H, :].T)
        wh = wh.at[:H, g * HP:g * HP + H].set(w_hh[g * H:(g + 1) * H, :].T)
        bi = bi.at[0, g * HP:g * HP + H].set(b_ih[g * H:(g + 1) * H])
        bh = bh.at[0, g * HP:g * HP + H].set(b_hh[g * H:(g + 1) * H])

    lin_w_t = jnp.zeros((HP, V), jnp.float32).at[:H, :].set(lin_w.T)

    return dict(
        wi=wi,                                     # (V, 3*HP)
        wh=wh,                                     # (HP, 3*HP)
        bi=bi,                                     # (1, 3*HP)
        bh=bh,                                     # (1, 3*HP)
        lin_w_t=lin_w_t,                           # (HP, V)
        lin_b=lin_b.reshape(1, V).astype(jnp.float32),
        hw_w=hw_w.reshape(-1).astype(jnp.float32),  # (HW,)  -> SMEM scalars
        hw_b=hw_b.reshape(-1).astype(jnp.float32),  # (1,)   -> SMEM scalar
    )


def delta_x_rnn_forward(x, params, *, output_fun, rnn_layers=1):
    """x: (batch, seq, vars) float32 -> (batch, vars) float32."""
    assert rnn_layers == 1, "TODO(synk): multi-layer GRU not implemented"
    B, T, V = x.shape
    HW = params["hw_w"].shape[0]
    HP = params["wh"].shape[0]
    assert 0 < HW <= T

    # Time-major, flattened: row t*B + b == x[b, t, :].  One-time XLA transpose
    # outside the kernel; makes both gi_t and the highway slices contiguous
    # static slices inside the kernel (no in-kernel reshapes).
    x_tm = jnp.transpose(x, (1, 0, 2)).reshape(T * B, V)

    kernel = functools.partial(_gru_forward_kernel, batch=B, seq=T, hw=HW,
                               hp=HP, apply_output=output_fun)
    vmem = pl.BlockSpec(memory_space=pltpu.MemorySpace.VMEM)
    smem = pl.BlockSpec(memory_space=pltpu.MemorySpace.SMEM)

    # TODO(synk): add a batch grid with dimension_semantics=("parallel",) for
    # large B so the second TensorCore on v7x is used.
    return pl.pallas_call(
        kernel,
        out_shape=jax.ShapeDtypeStruct((B, V), jnp.float32),
        in_specs=[vmem] * 7 + [smem, smem],
        out_specs=vmem,
    )(x_tm, params["wi"], params["wh"], params["bi"], params["bh"],
      params["lin_w_t"], params["lin_b"], params["hw_w"], params["hw_b"])


def reference_forward(x, w_ih, w_hh, b_ih, b_hh, lin_w, lin_b, hw_w, hw_b, hw,
                      output_fun):
    """Pure-JAX reference mirroring the PyTorch forward."""
    B, T, V = x.shape
    H = w_ih.shape[0] // 3
    h = jnp.zeros((B, H), jnp.float32)
    for t in range(T):
        x_t = x[:, t, :]
        gi = x_t @ w_ih.T + b_ih
        gh = h @ w_hh.T + b_hh
        i_r, i_z, i_n = gi[:, :H], gi[:, H:2 * H], gi[:, 2 * H:]
        h_r, h_z, h_n = gh[:, :H], gh[:, H:2 * H], gh[:, 2 * H:]
        r = jax.nn.sigmoid(i_r + h_r)
        z = jax.nn.sigmoid(i_z + h_z)
        n = jnp.tanh(i_n + r * h_n)
        h = (1.0 - z) * n + z * h
    out = h @ lin_w.T + lin_b
    zz = x[:, T - hw:, :]                                # (B, HW, V)
    zz = jnp.transpose(zz, (0, 2, 1)).reshape(-1, hw)    # (B*V, HW)
    zh = zz @ hw_w.T + hw_b                              # (B*V, 1)
    out = out + zh.reshape(B, V)
    if output_fun == "sigmoid":
        out = jax.nn.sigmoid(out)
    elif output_fun == "tanh":
        out = jnp.tanh(out)
    return out


if __name__ == "__main__":
    # Small shapes consistent with the module:
    # batch=2, seq (= window-1) = 8, variables (data.m) = 4,
    # hidRNN = 32, highway_window = 4, rnn_layers = 1, output_fun = 'sigmoid'.
    B, T, V, H, HW = 2, 8, 4, 32, 4
    output_fun = "sigmoid"

    key = jax.random.PRNGKey(0)
    keys = jax.random.split(key, 9)

    kg = 1.0 / np.sqrt(H)
    w_ih = jax.random.uniform(keys[0], (3 * H, V), jnp.float32, -kg, kg)
    w_hh = jax.random.uniform(keys[1], (3 * H, H), jnp.float32, -kg, kg)
    b_ih = jax.random.uniform(keys[2], (3 * H,), jnp.float32, -kg, kg)
    b_hh = jax.random.uniform(keys[3], (3 * H,), jnp.float32, -kg, kg)
    kl = 1.0 / np.sqrt(H)
    lin_w = jax.random.uniform(keys[4], (V, H), jnp.float32, -kl, kl)
    lin_b = jax.random.uniform(keys[5], (V,), jnp.float32, -kl, kl)
    kh = 1.0 / np.sqrt(HW)
    hw_w = jax.random.uniform(keys[6], (1, HW), jnp.float32, -kh, kh)
    hw_b = jax.random.uniform(keys[7], (1,), jnp.float32, -kh, kh)
    x = jax.random.normal(keys[8], (B, T, V), jnp.float32)

    params = pack_params(w_ih, w_hh, b_ih, b_hh, lin_w, lin_b, hw_w, hw_b)

    out = delta_x_rnn_forward(x, params, output_fun=output_fun, rnn_layers=1)
    out = jax.block_until_ready(out)

    ref = reference_forward(x, w_ih, w_hh, b_ih, b_hh, lin_w, lin_b,
                            hw_w, hw_b, HW, output_fun)
    np.testing.assert_allclose(np.asarray(out), np.asarray(ref),
                               atol=1e-4, rtol=1e-4)
    print("KERNEL_OK")
</pallas_src>

<mosaic_0001>
module attributes {stable_mosaic.version = 11 : i64} {
  func.func @_gru_forward_kernel(%arg0: memref<16x4xf32, #tpu.memory_space<vmem>>, %arg1: memref<4x384xf32, #tpu.memory_space<vmem>>, %arg2: memref<128x384xf32, #tpu.memory_space<vmem>>, %arg3: memref<1x384xf32, #tpu.memory_space<vmem>>, %arg4: memref<1x384xf32, #tpu.memory_space<vmem>>, %arg5: memref<128x4xf32, #tpu.memory_space<vmem>>, %arg6: memref<1x4xf32, #tpu.memory_space<vmem>>, %arg7: memref<4xf32, #tpu.memory_space<smem>>, %arg8: memref<1xf32, #tpu.memory_space<smem>>, %arg9: memref<2x4xf32, #tpu.memory_space<vmem>>) attributes {dimension_semantics = [], scalar_prefetch = 0 : i64, scratch_operands = 0 : i64, tpu.core_type = #tpu.core_type<tc>} {
    %c0 = arith.constant 0 : index
    %c0_0 = arith.constant 0 : index
    %0 = vector.load %arg0[%c0, %c0_0] : memref<16x4xf32, #tpu.memory_space<vmem>>, vector<16x4xf32>
    %c0_1 = arith.constant 0 : index
    %c0_2 = arith.constant 0 : index
    %1 = vector.load %arg1[%c0_1, %c0_2] : memref<4x384xf32, #tpu.memory_space<vmem>>, vector<4x384xf32>
    %cst = arith.constant dense<0.000000e+00> : vector<16x384xf32>
    %2 = tpu.matmul %0, %1, %cst {dimension_numbers = #tpu.dot_dimension_numbers<[1], [0], [0], [1], [0, 0, 1, 1], [], []>} : vector<16x4xf32>, vector<4x384xf32>, vector<16x384xf32> -> vector<16x384xf32>
    %c0_3 = arith.constant 0 : index
    %c0_4 = arith.constant 0 : index
    %3 = vector.load %arg3[%c0_3, %c0_4] : memref<1x384xf32, #tpu.memory_space<vmem>>, vector<1x384xf32>
    %4 = vector.broadcast %3 : vector<1x384xf32> to vector<16x384xf32>
    %5 = arith.addf %2, %4 : vector<16x384xf32>
    %c0_5 = arith.constant 0 : index
    %c0_6 = arith.constant 0 : index
    %6 = vector.load %arg2[%c0_5, %c0_6] : memref<128x384xf32, #tpu.memory_space<vmem>>, vector<128x384xf32>
    %c0_7 = arith.constant 0 : index
    %c0_8 = arith.constant 0 : index
    %7 = vector.load %arg4[%c0_7, %c0_8] : memref<1x384xf32, #tpu.memory_space<vmem>>, vector<1x384xf32>
    %8 = vector.shape_cast %7 : vector<1x384xf32> to vector<1x384xf32>
    %9 = vector.broadcast %8 : vector<1x384xf32> to vector<2x384xf32>
    %cst_9 = arith.constant 0.000000e+00 : f32
    %10 = vector.broadcast %cst_9 : f32 to vector<2x128xf32>
    %11 = vector.extract_strided_slice %5 {offsets = [0, 0], sizes = [2, 384], strides = [1, 1]} : vector<16x384xf32> to vector<2x384xf32>
    %cst_10 = arith.constant dense<0.000000e+00> : vector<2x384xf32>
    %12 = tpu.matmul %10, %6, %cst_10 {dimension_numbers = #tpu.dot_dimension_numbers<[1], [0], [0], [1], [0, 0, 1, 1], [], []>} : vector<2x128xf32>, vector<128x384xf32>, vector<2x384xf32> -> vector<2x384xf32>
    %13 = arith.addf %12, %9 : vector<2x384xf32>
    %14 = vector.extract_strided_slice %11 {offsets = [0, 0], sizes = [2, 256], strides = [1, 1]} : vector<2x384xf32> to vector<2x256xf32>
    %15 = vector.extract_strided_slice %13 {offsets = [0, 0], sizes = [2, 256], strides = [1, 1]} : vector<2x384xf32> to vector<2x256xf32>
    %16 = arith.addf %14, %15 : vector<2x256xf32>
    %17 = arith.negf %16 : vector<2x256xf32>
    %18 = math.exp %17 : vector<2x256xf32>
    %cst_11 = arith.constant 1.000000e+00 : f32
    %19 = vector.broadcast %cst_11 : f32 to vector<2x256xf32>
    %20 = arith.addf %19, %18 : vector<2x256xf32>
    %21 = arith.divf %19, %20 : vector<2x256xf32>
    %22 = vector.extract_strided_slice %21 {offsets = [0, 0], sizes = [2, 128], strides = [1, 1]} : vector<2x256xf32> to vector<2x128xf32>
    %23 = vector.extract_strided_slice %21 {offsets = [0, 128], sizes = [2, 128], strides = [1, 1]} : vector<2x256xf32> to vector<2x128xf32>
    %24 = vector.extract_strided_slice %11 {offsets = [0, 256], sizes = [2, 128], strides = [1, 1]} : vector<2x384xf32> to vector<2x128xf32>
    %25 = vector.extract_strided_slice %13 {offsets = [0, 256], sizes = [2, 128], strides = [1, 1]} : vector<2x384xf32> to vector<2x128xf32>
    %26 = arith.mulf %22, %25 : vector<2x128xf32>
    %27 = arith.addf %24, %26 : vector<2x128xf32>
    %28 = math.tanh %27 : vector<2x128xf32>
    %29 = arith.subf %10, %28 : vector<2x128xf32>
    %30 = arith.mulf %23, %29 : vector<2x128xf32>
    %31 = arith.addf %28, %30 : vector<2x128xf32>
    %32 = vector.extract_strided_slice %5 {offsets = [2, 0], sizes = [2, 384], strides = [1, 1]} : vector<16x384xf32> to vector<2x384xf32>
    %cst_12 = arith.constant dense<0.000000e+00> : vector<2x384xf32>
    %33 = tpu.matmul %31, %6, %cst_12 {dimension_numbers = #tpu.dot_dimension_numbers<[1], [0], [0], [1], [0, 0, 1, 1], [], []>} : vector<2x128xf32>, vector<128x384xf32>, vector<2x384xf32> -> vector<2x384xf32>
    %34 = arith.addf %33, %9 : vector<2x384xf32>
    %35 = vector.extract_strided_slice %32 {offsets = [0, 0], sizes = [2, 256], strides = [1, 1]} : vector<2x384xf32> to vector<2x256xf32>
    %36 = vector.extract_strided_slice %34 {offsets = [0, 0], sizes = [2, 256], strides = [1, 1]} : vector<2x384xf32> to vector<2x256xf32>
    %37 = arith.addf %35, %36 : vector<2x256xf32>
    %38 = arith.negf %37 : vector<2x256xf32>
    %39 = math.exp %38 : vector<2x256xf32>
    %cst_13 = arith.constant 1.000000e+00 : f32
    %40 = vector.broadcast %cst_13 : f32 to vector<2x256xf32>
    %41 = arith.addf %40, %39 : vector<2x256xf32>
    %42 = arith.divf %40, %41 : vector<2x256xf32>
    %43 = vector.extract_strided_slice %42 {offsets = [0, 0], sizes = [2, 128], strides = [1, 1]} : vector<2x256xf32> to vector<2x128xf32>
    %44 = vector.extract_strided_slice %42 {offsets = [0, 128], sizes = [2, 128], strides = [1, 1]} : vector<2x256xf32> to vector<2x128xf32>
    %45 = vector.extract_strided_slice %32 {offsets = [0, 256], sizes = [2, 128], strides = [1, 1]} : vector<2x384xf32> to vector<2x128xf32>
    %46 = vector.extract_strided_slice %34 {offsets = [0, 256], sizes = [2, 128], strides = [1, 1]} : vector<2x384xf32> to vector<2x128xf32>
    %47 = arith.mulf %43, %46 : vector<2x128xf32>
    %48 = arith.addf %45, %47 : vector<2x128xf32>
    %49 = math.tanh %48 : vector<2x128xf32>
    %50 = arith.subf %31, %49 : vector<2x128xf32>
    %51 = arith.mulf %44, %50 : vector<2x128xf32>
    %52 = arith.addf %49, %51 : vector<2x128xf32>
    %53 = vector.extract_strided_slice %5 {offsets = [4, 0], sizes = [2, 384], strides = [1, 1]} : vector<16x384xf32> to vector<2x384xf32>
    %cst_14 = arith.constant dense<0.000000e+00> : vector<2x384xf32>
    %54 = tpu.matmul %52, %6, %cst_14 {dimension_numbers = #tpu.dot_dimension_numbers<[1], [0], [0], [1], [0, 0, 1, 1], [], []>} : vector<2x128xf32>, vector<128x384xf32>, vector<2x384xf32> -> vector<2x384xf32>
    %55 = arith.addf %54, %9 : vector<2x384xf32>
    %56 = vector.extract_strided_slice %53 {offsets = [0, 0], sizes = [2, 256], strides = [1, 1]} : vector<2x384xf32> to vector<2x256xf32>
    %57 = vector.extract_strided_slice %55 {offsets = [0, 0], sizes = [2, 256], strides = [1, 1]} : vector<2x384xf32> to vector<2x256xf32>
    %58 = arith.addf %56, %57 : vector<2x256xf32>
    %59 = arith.negf %58 : vector<2x256xf32>
    %60 = math.exp %59 : vector<2x256xf32>
    %cst_15 = arith.constant 1.000000e+00 : f32
    %61 = vector.broadcast %cst_15 : f32 to vector<2x256xf32>
    %62 = arith.addf %61, %60 : vector<2x256xf32>
    %63 = arith.divf %61, %62 : vector<2x256xf32>
    %64 = vector.extract_strided_slice %63 {offsets = [0, 0], sizes = [2, 128], strides = [1, 1]} : vector<2x256xf32> to vector<2x128xf32>
    %65 = vector.extract_strided_slice %63 {offsets = [0, 128], sizes = [2, 128], strides = [1, 1]} : vector<2x256xf32> to vector<2x128xf32>
    %66 = vector.extract_strided_slice %53 {offsets = [0, 256], sizes = [2, 128], strides = [1, 1]} : vector<2x384xf32> to vector<2x128xf32>
    %67 = vector.extract_strided_slice %55 {offsets = [0, 256], sizes = [2, 128], strides = [1, 1]} : vector<2x384xf32> to vector<2x128xf32>
    %68 = arith.mulf %64, %67 : vector<2x128xf32>
    %69 = arith.addf %66, %68 : vector<2x128xf32>
    %70 = math.tanh %69 : vector<2x128xf32>
    %71 = arith.subf %52, %70 : vector<2x128xf32>
    %72 = arith.mulf %65, %71 : vector<2x128xf32>
    %73 = arith.addf %70, %72 : vector<2x128xf32>
    %74 = vector.extract_strided_slice %5 {offsets = [6, 0], sizes = [2, 384], strides = [1, 1]} : vector<16x384xf32> to vector<2x384xf32>
    %cst_16 = arith.constant dense<0.000000e+00> : vector<2x384xf32>
    %75 = tpu.matmul %73, %6, %cst_16 {dimension_numbers = #tpu.dot_dimension_numbers<[1], [0], [0], [1], [0, 0, 1, 1], [], []>} : vector<2x128xf32>, vector<128x384xf32>, vector<2x384xf32> -> vector<2x384xf32>
    %76 = arith.addf %75, %9 : vector<2x384xf32>
    %77 = vector.extract_strided_slice %74 {offsets = [0, 0], sizes = [2, 256], strides = [1, 1]} : vector<2x384xf32> to vector<2x256xf32>
    %78 = vector.extract_strided_slice %76 {offsets = [0, 0], sizes = [2, 256], strides = [1, 1]} : vector<2x384xf32> to vector<2x256xf32>
    %79 = arith.addf %77, %78 : vector<2x256xf32>
    %80 = arith.negf %79 : vector<2x256xf32>
    %81 = math.exp %80 : vector<2x256xf32>
    %cst_17 = arith.constant 1.000000e+00 : f32
    %82 = vector.broadcast %cst_17 : f32 to vector<2x256xf32>
    %83 = arith.addf %82, %81 : vector<2x256xf32>
    %84 = arith.divf %82, %83 : vector<2x256xf32>
    %85 = vector.extract_strided_slice %84 {offsets = [0, 0], sizes = [2, 128], strides = [1, 1]} : vector<2x256xf32> to vector<2x128xf32>
    %86 = vector.extract_strided_slice %84 {offsets = [0, 128], sizes = [2, 128], strides = [1, 1]} : vector<2x256xf32> to vector<2x128xf32>
    %87 = vector.extract_strided_slice %74 {offsets = [0, 256], sizes = [2, 128], strides = [1, 1]} : vector<2x384xf32> to vector<2x128xf32>
    %88 = vector.extract_strided_slice %76 {offsets = [0, 256], sizes = [2, 128], strides = [1, 1]} : vector<2x384xf32> to vector<2x128xf32>
    %89 = arith.mulf %85, %88 : vector<2x128xf32>
    %90 = arith.addf %87, %89 : vector<2x128xf32>
    %91 = math.tanh %90 : vector<2x128xf32>
    %92 = arith.subf %73, %91 : vector<2x128xf32>
    %93 = arith.mulf %86, %92 : vector<2x128xf32>
    %94 = arith.addf %91, %93 : vector<2x128xf32>
    %95 = vector.extract_strided_slice %5 {offsets = [8, 0], sizes = [2, 384], strides = [1, 1]} : vector<16x384xf32> to vector<2x384xf32>
    %cst_18 = arith.constant dense<0.000000e+00> : vector<2x384xf32>
    %96 = tpu.matmul %94, %6, %cst_18 {dimension_numbers = #tpu.dot_dimension_numbers<[1], [0], [0], [1], [0, 0, 1, 1], [], []>} : vector<2x128xf32>, vector<128x384xf32>, vector<2x384xf32> -> vector<2x384xf32>
    %97 = arith.addf %96, %9 : vector<2x384xf32>
    %98 = vector.extract_strided_slice %95 {offsets = [0, 0], sizes = [2, 256], strides = [1, 1]} : vector<2x384xf32> to vector<2x256xf32>
    %99 = vector.extract_strided_slice %97 {offsets = [0, 0], sizes = [2, 256], strides = [1, 1]} : vector<2x384xf32> to vector<2x256xf32>
    %100 = arith.addf %98, %99 : vector<2x256xf32>
    %101 = arith.negf %100 : vector<2x256xf32>
    %102 = math.exp %101 : vector<2x256xf32>
    %cst_19 = arith.constant 1.000000e+00 : f32
    %103 = vector.broadcast %cst_19 : f32 to vector<2x256xf32>
    %104 = arith.addf %103, %102 : vector<2x256xf32>
    %105 = arith.divf %103, %104 : vector<2x256xf32>
    %106 = vector.extract_strided_slice %105 {offsets = [0, 0], sizes = [2, 128], strides = [1, 1]} : vector<2x256xf32> to vector<2x128xf32>
    %107 = vector.extract_strided_slice %105 {offsets = [0, 128], sizes = [2, 128], strides = [1, 1]} : vector<2x256xf32> to vector<2x128xf32>
    %108 = vector.extract_strided_slice %95 {offsets = [0, 256], sizes = [2, 128], strides = [1, 1]} : vector<2x384xf32> to vector<2x128xf32>
    %109 = vector.extract_strided_slice %97 {offsets = [0, 256], sizes = [2, 128], strides = [1, 1]} : vector<2x384xf32> to vector<2x128xf32>
    %110 = arith.mulf %106, %109 : vector<2x128xf32>
    %111 = arith.addf %108, %110 : vector<2x128xf32>
    %112 = math.tanh %111 : vector<2x128xf32>
    %113 = arith.subf %94, %112 : vector<2x128xf32>
    %114 = arith.mulf %107, %113 : vector<2x128xf32>
    %115 = arith.addf %112, %114 : vector<2x128xf32>
    %116 = vector.extract_strided_slice %5 {offsets = [10, 0], sizes = [2, 384], strides = [1, 1]} : vector<16x384xf32> to vector<2x384xf32>
    %cst_20 = arith.constant dense<0.000000e+00> : vector<2x384xf32>
    %117 = tpu.matmul %115, %6, %cst_20 {dimension_numbers = #tpu.dot_dimension_numbers<[1], [0], [0], [1], [0, 0, 1, 1], [], []>} : vector<2x128xf32>, vector<128x384xf32>, vector<2x384xf32> -> vector<2x384xf32>
    %118 = arith.addf %117, %9 : vector<2x384xf32>
    %119 = vector.extract_strided_slice %116 {offsets = [0, 0], sizes = [2, 256], strides = [1, 1]} : vector<2x384xf32> to vector<2x256xf32>
    %120 = vector.extract_strided_slice %118 {offsets = [0, 0], sizes = [2, 256], strides = [1, 1]} : vector<2x384xf32> to vector<2x256xf32>
    %121 = arith.addf %119, %120 : vector<2x256xf32>
    %122 = arith.negf %121 : vector<2x256xf32>
    %123 = math.exp %122 : vector<2x256xf32>
    %cst_21 = arith.constant 1.000000e+00 : f32
    %124 = vector.broadcast %cst_21 : f32 to vector<2x256xf32>
    %125 = arith.addf %124, %123 : vector<2x256xf32>
    %126 = arith.divf %124, %125 : vector<2x256xf32>
    %127 = vector.extract_strided_slice %126 {offsets = [0, 0], sizes = [2, 128], strides = [1, 1]} : vector<2x256xf32> to vector<2x128xf32>
    %128 = vector.extract_strided_slice %126 {offsets = [0, 128], sizes = [2, 128], strides = [1, 1]} : vector<2x256xf32> to vector<2x128xf32>
    %129 = vector.extract_strided_slice %116 {offsets = [0, 256], sizes = [2, 128], strides = [1, 1]} : vector<2x384xf32> to vector<2x128xf32>
    %130 = vector.extract_strided_slice %118 {offsets = [0, 256], sizes = [2, 128], strides = [1, 1]} : vector<2x384xf32> to vector<2x128xf32>
    %131 = arith.mulf %127, %130 : vector<2x128xf32>
    %132 = arith.addf %129, %131 : vector<2x128xf32>
    %133 = math.tanh %132 : vector<2x128xf32>
    %134 = arith.subf %115, %133 : vector<2x128xf32>
    %135 = arith.mulf %128, %134 : vector<2x128xf32>
    %136 = arith.addf %133, %135 : vector<2x128xf32>
    %137 = vector.extract_strided_slice %5 {offsets = [12, 0], sizes = [2, 384], strides = [1, 1]} : vector<16x384xf32> to vector<2x384xf32>
    %cst_22 = arith.constant dense<0.000000e+00> : vector<2x384xf32>
    %138 = tpu.matmul %136, %6, %cst_22 {dimension_numbers = #tpu.dot_dimension_numbers<[1], [0], [0], [1], [0, 0, 1, 1], [], []>} : vector<2x128xf32>, vector<128x384xf32>, vector<2x384xf32> -> vector<2x384xf32>
    %139 = arith.addf %138, %9 : vector<2x384xf32>
    %140 = vector.extract_strided_slice %137 {offsets = [0, 0], sizes = [2, 256], strides = [1, 1]} : vector<2x384xf32> to vector<2x256xf32>
    %141 = vector.extract_strided_slice %139 {offsets = [0, 0], sizes = [2, 256], strides = [1, 1]} : vector<2x384xf32> to vector<2x256xf32>
    %142 = arith.addf %140, %141 : vector<2x256xf32>
    %143 = arith.negf %142 : vector<2x256xf32>
    %144 = math.exp %143 : vector<2x256xf32>
    %cst_23 = arith.constant 1.000000e+00 : f32
    %145 = vector.broadcast %cst_23 : f32 to vector<2x256xf32>
    %146 = arith.addf %145, %144 : vector<2x256xf32>
    %147 = arith.divf %145, %146 : vector<2x256xf32>
    %148 = vector.extract_strided_slice %147 {offsets = [0, 0], sizes = [2, 128], strides = [1, 1]} : vector<2x256xf32> to vector<2x128xf32>
    %149 = vector.extract_strided_slice %147 {offsets = [0, 128], sizes = [2, 128], strides = [1, 1]} : vector<2x256xf32> to vector<2x128xf32>
    %150 = vector.extract_strided_slice %137 {offsets = [0, 256], sizes = [2, 128], strides = [1, 1]} : vector<2x384xf32> to vector<2x128xf32>
    %151 = vector.extract_strided_slice %139 {offsets = [0, 256], sizes = [2, 128], strides = [1, 1]} : vector<2x384xf32> to vector<2x128xf32>
    %152 = arith.mulf %148, %151 : vector<2x128xf32>
    %153 = arith.addf %150, %152 : vector<2x128xf32>
    %154 = math.tanh %153 : vector<2x128xf32>
    %155 = arith.subf %136, %154 : vector<2x128xf32>
    %156 = arith.mulf %149, %155 : vector<2x128xf32>
    %157 = arith.addf %154, %156 : vector<2x128xf32>
    %158 = vector.extract_strided_slice %5 {offsets = [14, 0], sizes = [2, 384], strides = [1, 1]} : vector<16x384xf32> to vector<2x384xf32>
    %cst_24 = arith.constant dense<0.000000e+00> : vector<2x384xf32>
    %159 = tpu.matmul %157, %6, %cst_24 {dimension_numbers = #tpu.dot_dimension_numbers<[1], [0], [0], [1], [0, 0, 1, 1], [], []>} : vector<2x128xf32>, vector<128x384xf32>, vector<2x384xf32> -> vector<2x384xf32>
    %160 = arith.addf %159, %9 : vector<2x384xf32>
    %161 = vector.extract_strided_slice %158 {offsets = [0, 0], sizes = [2, 256], strides = [1, 1]} : vector<2x384xf32> to vector<2x256xf32>
    %162 = vector.extract_strided_slice %160 {offsets = [0, 0], sizes = [2, 256], strides = [1, 1]} : vector<2x384xf32> to vector<2x256xf32>
    %163 = arith.addf %161, %162 : vector<2x256xf32>
    %164 = arith.negf %163 : vector<2x256xf32>
    %165 = math.exp %164 : vector<2x256xf32>
    %cst_25 = arith.constant 1.000000e+00 : f32
    %166 = vector.broadcast %cst_25 : f32 to vector<2x256xf32>
    %167 = arith.addf %166, %165 : vector<2x256xf32>
    %168 = arith.divf %166, %167 : vector<2x256xf32>
    %169 = vector.extract_strided_slice %168 {offsets = [0, 0], sizes = [2, 128], strides = [1, 1]} : vector<2x256xf32> to vector<2x128xf32>
    %170 = vector.extract_strided_slice %168 {offsets = [0, 128], sizes = [2, 128], strides = [1, 1]} : vector<2x256xf32> to vector<2x128xf32>
    %171 = vector.extract_strided_slice %158 {offsets = [0, 256], sizes = [2, 128], strides = [1, 1]} : vector<2x384xf32> to vector<2x128xf32>
    %172 = vector.extract_strided_slice %160 {offsets = [0, 256], sizes = [2, 128], strides = [1, 1]} : vector<2x384xf32> to vector<2x128xf32>
    %173 = arith.mulf %169, %172 : vector<2x128xf32>
    %174 = arith.addf %171, %173 : vector<2x128xf32>
    %175 = math.tanh %174 : vector<2x128xf32>
    %176 = arith.subf %157, %175 : vector<2x128xf32>
    %177 = arith.mulf %170, %176 : vector<2x128xf32>
    %178 = arith.addf %175, %177 : vector<2x128xf32>
    %c0_26 = arith.constant 0 : index
    %c0_27 = arith.constant 0 : index
    %179 = vector.load %arg5[%c0_26, %c0_27] : memref<128x4xf32, #tpu.memory_space<vmem>>, vector<128x4xf32>
    %cst_28 = arith.constant dense<0.000000e+00> : vector<2x4xf32>
    %180 = tpu.matmul %178, %179, %cst_28 {dimension_numbers = #tpu.dot_dimension_numbers<[1], [0], [0], [1], [0, 0, 1, 1], [], []>} : vector<2x128xf32>, vector<128x4xf32>, vector<2x4xf32> -> vector<2x4xf32>
    %c0_29 = arith.constant 0 : index
    %c0_30 = arith.constant 0 : index
    %181 = vector.load %arg6[%c0_29, %c0_30] : memref<1x4xf32, #tpu.memory_space<vmem>>, vector<1x4xf32>
    %182 = vector.broadcast %181 : vector<1x4xf32> to vector<2x4xf32>
    %183 = arith.addf %180, %182 : vector<2x4xf32>
    %c0_31 = arith.constant 0 : index
    %184 = memref.load %arg8[%c0_31] : memref<1xf32, #tpu.memory_space<smem>>
    %185 = vector.broadcast %184 : f32 to vector<2x4xf32>
    %186 = arith.addf %183, %185 : vector<2x4xf32>
    %187 = vector.extract_strided_slice %0 {offsets = [8, 0], sizes = [2, 4], strides = [1, 1]} : vector<16x4xf32> to vector<2x4xf32>
    %c0_32 = arith.constant 0 : index
    %188 = memref.load %arg7[%c0_32] : memref<4xf32, #tpu.memory_space<smem>>
    %189 = vector.broadcast %188 : f32 to vector<2x4xf32>
    %190 = arith.mulf %189, %187 : vector<2x4xf32>
    %191 = arith.addf %186, %190 : vector<2x4xf32>
    %192 = vector.extract_strided_slice %0 {offsets = [10, 0], sizes = [2, 4], strides = [1, 1]} : vector<16x4xf32> to vector<2x4xf32>
    %c1 = arith.constant 1 : index
    %193 = memref.load %arg7[%c1] : memref<4xf32, #tpu.memory_space<smem>>
    %194 = vector.broadcast %193 : f32 to vector<2x4xf32>
    %195 = arith.mulf %194, %192 : vector<2x4xf32>
    %196 = arith.addf %191, %195 : vector<2x4xf32>
    %197 = vector.extract_strided_slice %0 {offsets = [12, 0], sizes = [2, 4], strides = [1, 1]} : vector<16x4xf32> to vector<2x4xf32>
    %c2 = arith.constant 2 : index
    %198 = memref.load %arg7[%c2] : memref<4xf32, #tpu.memory_space<smem>>
    %199 = vector.broadcast %198 : f32 to vector<2x4xf32>
    %200 = arith.mulf %199, %197 : vector<2x4xf32>
    %201 = arith.addf %196, %200 : vector<2x4xf32>
    %202 = vector.extract_strided_slice %0 {offsets = [14, 0], sizes = [2, 4], strides = [1, 1]} : vector<16x4xf32> to vector<2x4xf32>
    %c3 = arith.constant 3 : index
    %203 = memref.load %arg7[%c3] : memref<4xf32, #tpu.memory_space<smem>>
    %204 = vector.broadcast %203 : f32 to vector<2x4xf32>
    %205 = arith.mulf %204, %202 : vector<2x4xf32>
    %206 = arith.addf %201, %205 : vector<2x4xf32>
    %207 = arith.negf %206 : vector<2x4xf32>
    %208 = math.exp %207 : vector<2x4xf32>
    %cst_33 = arith.constant 1.000000e+00 : f32
    %209 = vector.broadcast %cst_33 : f32 to vector<2x4xf32>
    %210 = arith.addf %209, %208 : vector<2x4xf32>
    %211 = arith.divf %209, %210 : vector<2x4xf32>
    %c0_34 = arith.constant 0 : index
    %c0_35 = arith.constant 0 : index
    %212 = vector.load %arg9[%c0_34, %c0_35] : memref<2x4xf32, #tpu.memory_space<vmem>>, vector<2x4xf32>
    tpu.vector_store %arg9[%c0_34, %c0_35], %211 {strides = array<i32>} : memref<2x4xf32, #tpu.memory_space<vmem>>, vector<2x4xf32>,
    return
  }
}

</mosaic_0001>

<llo_original>
// kernel: tpu_custom_call.1
$region0: #{tpu_custom_call.1}
  #allocation0 [shape = 'u32[]', space=smem, size = 0x4, offset = 0x4, fixed_abs, tag = 'smem constant byte address 0x4 - core index']
  #allocation1 [shape = 'u32[144,128]{1,0:T(1,128)}', space=vmem, size = 0x12000, scoped, tag = 'internal scratch']
  #allocation2 [shape = 'f32[1]{0:T(128)S(6)}', space=smem, size = 0x200, scoped, tag = 'scoped memory for tpu_custom_call.1']
  %s0 = inlined_call_operand.vmem [shape: f32[16,4], index: 0, kind: input, shape index: {}]
  %s1 = inlined_call_operand.vmem [shape: f32[4,384], index: 1, kind: input, shape index: {}]
  %s2 = inlined_call_operand.hbm [shape: f32[128,384], index: 2, kind: input, shape index: {}]
  %s3 = inlined_call_operand.vmem [shape: f32[1,384], index: 3, kind: input, shape index: {}]
  %s4 = inlined_call_operand.vmem [shape: f32[1,384], index: 4, kind: input, shape index: {}]
  %s5 = inlined_call_operand.vmem [shape: f32[128,4], index: 5, kind: input, shape index: {}]
  %s6 = inlined_call_operand.vmem [shape: f32[1,4], index: 6, kind: input, shape index: {}]
  %s7 = inlined_call_operand.vmem [shape: f32[4], index: 7, kind: input, shape index: {}]
  %s8 = inlined_call_operand.<no memory space> [shape: f32[1], index: 8, kind: input, shape index: {}]
  %s9 = inlined_call_operand.hbm [shape: f32[2,4], index: 9, kind: output, shape index: {}]
  %s10 = sld [smem:[#allocation0]]
  $region54: #{tpu_custom_call.1} parent=0
    _
  %s12 = ssub.s32 1, %s10
  %s13 = scalar_select 0, %s12, %s10
  %14 = sst [smem:[#allocation2]] %s8
  $region1: #{tpu_custom_call.1} parent=0
    #allocation3 [shape = 'u8[196608]{0}', space=vmem, size = 0x30000, scoped, tag = 'input window, operand 2, single buffered']
    #allocation4 [shape = 's32[1]{0}', space=sflag, size = 0x4, scoped, tag = 'scoped memory for tpu_custom_call.1']
    #allocation5 [shape = 's32[1]{0}', space=sflag, size = 0x4, scoped, tag = 'scoped memory for tpu_custom_call.1']
    #allocation6 [shape = 's32[1]{0}', space=sflag, size = 0x4, scoped, tag = 'scoped memory for tpu_custom_call.1']
    #allocation7 [shape = 'u8[512]{0}', space=smem, size = 0x200, scoped, tag = 'input window, operand 7, single buffered']
    #allocation8 [shape = 'u8[1024]{0}', space=vmem, size = 0x400, scoped, tag = 'output window, operand 0, single buffered']
    %15 = vsyncpa [#allocation4], 0
    %16 = vsyncpa [#allocation6], 0
    %17 = vsyncpa [#allocation5], 0
    // Predicated region
    $region2: #{tpu_custom_call.1} parent=1 // pred_check
      _
    $region3: #{tpu_custom_call.1} parent=1 // pred_check_branch
      %19 = sbr.rel (0) target = $region5
    $region4: #{tpu_custom_call.1} parent=1 // pred_region
      _
    $region5: #{tpu_custom_call.1} parent=1 // pred_fallthru
      _
    // Predicated region
    $region6: #{tpu_custom_call.1} parent=1 // pred_check
      _
    $region7: #{tpu_custom_call.1} parent=1 // pred_check_branch
      %21 = sbr.rel (0) target = $region9
    $region8: #{tpu_custom_call.1} parent=1 // pred_region
      _
    $region9: #{tpu_custom_call.1} parent=1 // pred_fallthru
      _
    // Predicated region
    $region10: #{tpu_custom_call.1} parent=1 // pred_check
      _
    $region11: #{tpu_custom_call.1} parent=1 // pred_check_branch
      %23 = sbr.rel (0) target = $region13
    $region12: #{tpu_custom_call.1} parent=1 // pred_region
      %s25 = ssub.s32 6144, 6144
      %26 = vsyncadd [#allocation4], %s25
      %s27 = sshll.u32 [#allocation3], 4
      %s28 = int_to_ptr.vmem [resolvable:$true] %s27
      %33 = dma.hbm_to_vmem [thread:$0]  %s2, 6144, %s28, [#allocation4], 384, 384, 24
    $region13: #{tpu_custom_call.1} parent=1 // pred_fallthru
      _
    // Predicated region
    $region14: #{tpu_custom_call.1} parent=1 // pred_check
      _
    $region15: #{tpu_custom_call.1} parent=1 // pred_check_branch
      %35 = sbr.rel (0) target = $region17
    $region16: #{tpu_custom_call.1} parent=1 // pred_region
      _
    $region17: #{tpu_custom_call.1} parent=1 // pred_fallthru
      _
    // Predicated region
    $region18: #{tpu_custom_call.1} parent=1 // pred_check
      _
    $region19: #{tpu_custom_call.1} parent=1 // pred_check_branch
      %37 = sbr.rel (0) target = $region21
    $region20: #{tpu_custom_call.1} parent=1 // pred_region
      _
    $region21: #{tpu_custom_call.1} parent=1 // pred_fallthru
      _
    // Predicated region
    $region22: #{tpu_custom_call.1} parent=1 // pred_check
      _
    $region23: #{tpu_custom_call.1} parent=1 // pred_check_branch
      %39 = sbr.rel (0) target = $region25
    $region24: #{tpu_custom_call.1} parent=1 // pred_region
      _
    $region25: #{tpu_custom_call.1} parent=1 // pred_fallthru
      _
    // Predicated region
    $region26: #{tpu_custom_call.1} parent=1 // pred_check
      _
    $region27: #{tpu_custom_call.1} parent=1 // pred_check_branch
      %41 = sbr.rel (0) target = $region29
    $region28: #{tpu_custom_call.1} parent=1 // pred_region
      _
    $region29: #{tpu_custom_call.1} parent=1 // pred_fallthru
      _
    // Predicated region
    $region30: #{tpu_custom_call.1} parent=1 // pred_check
      _
    $region31: #{tpu_custom_call.1} parent=1 // pred_check_branch
      %43 = sbr.rel (0) target = $region33
    $region32: #{tpu_custom_call.1} parent=1 // pred_region
      %s45 = ssub.s32 16, 16
      %46 = vsyncadd [#allocation6], %s45
      %s48 = sshll.u32 %s7, 4
      %s49 = int_to_ptr.vmem [resolvable:$true] %s48
      %51 = dma.vmem_to_smem %s49, 16, [#allocation7], [#allocation6]
    $region33: #{tpu_custom_call.1} parent=1 // pred_fallthru
      _
    // Predicated region
    $region34: #{tpu_custom_call.1} parent=1 // pred_check
      _
    $region35: #{tpu_custom_call.1} parent=1 // pred_check_branch
      %53 = sbr.rel (0) target = $region37
    $region36: #{tpu_custom_call.1} parent=1 // pred_region
      _
    $region37: #{tpu_custom_call.1} parent=1 // pred_fallthru
      _
    // Predicated region
    $region38: #{tpu_custom_call.1} parent=1 // pred_check
      _
    $region39: #{tpu_custom_call.1} parent=1 // pred_check_branch
      %55 = sbr.rel (0) target = $region41
    $region40: #{tpu_custom_call.1} parent=1 // pred_region
      %56 = dma.done [#allocation4], 6144
    $region41: #{tpu_custom_call.1} parent=1 // pred_fallthru
      _
    // Predicated region
    $region42: #{tpu_custom_call.1} parent=1 // pred_check
      _
    $region43: #{tpu_custom_call.1} parent=1 // pred_check_branch
      %58 = sbr.rel (0) target = $region45
    $region44: #{tpu_custom_call.1} parent=1 // pred_region
      %59 = dma.done [#allocation6], 16
    $region45: #{tpu_custom_call.1} parent=1 // pred_fallthru
      _
    %60 = sfence
    %v61 = vld [vmem:[%s0] sm:$0xff]
    %v62 = vld [vmem:[%s0 + $0x8] sm:$0xff]
    %v63 = vld [vmem:[%s1] sm:$0xff]
    %v64 = vld [vmem:[%s1 + $0x8] sm:$0xf]
    %v65 = vld [vmem:[%s3] sm:$0x7]
    %v67 = vlaneseq
    %v68 = vshrl.u32 %v67, 7
    %v69 = vsub.s32 0, %v68
    %v70 = vrot.slane %v65, %v69
    %v71 = vlaneseq
    %v72 = vshrl.u32 %v71, 7
    %v73 = vsub.s32 1, %v72
    %v74 = vrot.slane %v65, %v73
    %v75 = vlaneseq
    %v76 = vshrl.u32 %v75, 7
    %v77 = vsub.s32 2, %v76
    %v78 = vrot.slane %v65, %v77
    %v84 = vcombine.high %v63, %v63
    %vm85 = vcmask 31744
    %v87 = vsel %vm85, %v61, 0
    %v90 = vsel %vm85, %v62, 0
    %vm92 = vcmask 1043456
    %v93 = vsel %vm92, %v63, 0
    %v95 = vsel %vm92, %v84, 0
    %v97 = vsel %vm92, %v64, 0
    %99 = vmatprep.subr.mxu0 0.0
    %100 = vmatpush1.msra.mxu0 0.0
    %101 = vmatprep.subr.mxu0 0.0
    %102 = vmatpush1.msra.mxu0 0.0
    %103 = vmatprep.subr.mxu0 0.0
    %104 = vmatpush1.msra.mxu0 0.0
    %105 = vmatprep.subr.mxu0 0.0
    %106 = vmatpush1.msra.mxu0 0.0
    %107 = vmatprep.subr.mxu0 0.0
    %108 = vmatpush1.msra.mxu0 0.0
    %109 = vmatprep.subr.mxu0 0.0
    %110 = vmatpush1.msra.mxu0 0.0
    %111 = vmatprep.subr.mxu0 0.0
    %112 = vmatpush1.msra.mxu0 0.0
    %113 = vmatprep.subr.mxu0 0.0
    %114 = vmatpush1.msra.mxu0 0.0
    %115 = vmatprep.subr.mxu0 0.0
    %116 = vmatpush1.msra.mxu0 0.0
    %117 = vmatprep.subr.mxu0 0.0
    %118 = vmatpush1.msra.mxu0 0.0
    %119 = vmatprep.subr.mxu0 0.0
    %120 = vmatpush1.msra.mxu0 0.0
    %121 = vmatprep.subr.mxu0 0.0
    %122 = vmatpush1.msra.mxu0 0.0
    %123 = vmatprep.subr.mxu0 0.0
    %124 = vmatpush1.msra.mxu0 0.0
    %125 = vmatprep.subr.mxu0 0.0
    %126 = vmatpush1.msra.mxu0 0.0
    %127 = vmatprep.subr.mxu0 0.0
    %128 = vmatpush1.msra.mxu0 0.0
    %129 = vmatprep.subr.mxu0 %v95
    %130 = vmatpush1.msra.mxu0 %v93
    %131 = vmatprep.subr.mxu0 0.0
    %132 = vmatpush2.msra.mxu0 0.0
    %133 = vmatprep.subr.mxu0 0.0
    %134 = vmatpush2.msra.mxu0 0.0
    %135 = vmatprep.subr.mxu0 0.0
    %136 = vmatpush2.msra.mxu0 0.0
    %137 = vmatprep.subr.mxu0 0.0
    %138 = vmatpush2.msra.mxu0 0.0
    %139 = vmatprep.subr.mxu0 0.0
    %140 = vmatpush2.msra.mxu0 0.0
    %141 = vmatprep.subr.mxu0 0.0
    %142 = vmatpush2.msra.mxu0 0.0
    %143 = vmatprep.subr.mxu0 0.0
    %144 = vmatpush2.msra.mxu0 0.0
    %145 = vmatprep.subr.mxu0 0.0
    %146 = vmatpush2.msra.mxu0 0.0
    %147 = vmatprep.subr.mxu0 0.0
    %148 = vmatpush2.msra.mxu0 0.0
    %149 = vmatprep.subr.mxu0 0.0
    %150 = vmatpush2.msra.mxu0 0.0
    %151 = vmatprep.subr.mxu0 0.0
    %152 = vmatpush2.msra.mxu0 0.0
    %153 = vmatprep.subr.mxu0 0.0
    %154 = vmatpush2.msra.mxu0 0.0
    %155 = vmatprep.subr.mxu0 0.0
    %156 = vmatpush2.msra.mxu0 0.0
    %157 = vmatprep.subr.mxu0 0.0
    %158 = vmatpush2.msra.mxu0 0.0
    %159 = vmatprep.subr.mxu0 0.0
    %160 = vmatpush2.msra.mxu0 0.0
    %161 = vmatprep.subr.mxu0 0.0
    %162 = vmatpush2.msra.mxu0 0.0
    %163 = vmatprep.mubr.f32.mxu0 0.0
    %164 = vmatmul.mubr.f32.gmra.mxu0 %v87
    %v165 = vpop.f32.mrf.mxu0
    %v166 = vadd.f32 %v70, %v165
    %v167 = vpop.f32.mrf.mxu0
    %v168 = vadd.f32 %v74, %v167
    %169 = vmatprep.mubr.f32.mxu0 0.0
    %170 = vmatmul.mubr.f32.gmra.mxu0 %v90
    %v171 = vpop.f32.mrf.mxu0
    %v172 = vadd.f32 %v70, %v171
    %v173 = vpop.f32.mrf.mxu0
    %v174 = vadd.f32 %v74, %v173
    %175 = vdwg.mxu0
    %176 = vmatprep.subr.mxu0 0.0
    %177 = vmatpush1.msra.mxu0 0.0
    %178 = vmatprep.subr.mxu0 0.0
    %179 = vmatpush1.msra.mxu0 0.0
    %180 = vmatprep.subr.mxu0 0.0
    %181 = vmatpush1.msra.mxu0 0.0
    %182 = vmatprep.subr.mxu0 0.0
    %183 = vmatpush1.msra.mxu0 0.0
    %184 = vmatprep.subr.mxu0 0.0
    %185 = vmatpush1.msra.mxu0 0.0
    %186 = vmatprep.subr.mxu0 0.0
    %187 = vmatpush1.msra.mxu0 0.0
    %188 = vmatprep.subr.mxu0 0.0
    %189 = vmatpush1.msra.mxu0 0.0
    %190 = vmatprep.subr.mxu0 0.0
    %191 = vmatpush1.msra.mxu0 0.0
    %192 = vmatprep.subr.mxu0 0.0
    %193 = vmatpush1.msra.mxu0 0.0
    %194 = vmatprep.subr.mxu0 0.0
    %195 = vmatpush1.msra.mxu0 0.0
    %196 = vmatprep.subr.mxu0 0.0
    %197 = vmatpush1.msra.mxu0 0.0
    %198 = vmatprep.subr.mxu0 0.0
    %199 = vmatpush1.msra.mxu0 0.0
    %200 = vmatprep.subr.mxu0 0.0
    %201 = vmatpush1.msra.mxu0 0.0
    %202 = vmatprep.subr.mxu0 0.0
    %203 = vmatpush1.msra.mxu0 0.0
    %204 = vmatprep.subr.mxu0 0.0
    %205 = vmatpush1.msra.mxu0 0.0
    %206 = vmatprep.subr.mxu0 0.0
    %207 = vmatpush1.msra.mxu0 %v97
    %208 = vmatprep.subr.mxu0 0.0
    %209 = vmatpush2.msra.mxu0 0.0
    %210 = vmatprep.subr.mxu0 0.0
    %211 = vmatpush2.msra.mxu0 0.0
    %212 = vmatprep.subr.mxu0 0.0
    %213 = vmatpush2.msra.mxu0 0.0
    %214 = vmatprep.subr.mxu0 0.0
    %215 = vmatpush2.msra.mxu0 0.0
    %216 = vmatprep.subr.mxu0 0.0
    %217 = vmatpush2.msra.mxu0 0.0
    %218 = vmatprep.subr.mxu0 0.0
    %219 = vmatpush2.msra.mxu0 0.0
    %220 = vmatprep.subr.mxu0 0.0
    %221 = vmatpush2.msra.mxu0 0.0
    %222 = vmatprep.subr.mxu0 0.0
    %223 = vmatpush2.msra.mxu0 0.0
    %224 = vmatprep.subr.mxu0 0.0
    %225 = vmatpush2.msra.mxu0 0.0
    %226 = vmatprep.subr.mxu0 0.0
    %227 = vmatpush2.msra.mxu0 0.0
    %228 = vmatprep.subr.mxu0 0.0
    %229 = vmatpush2.msra.mxu0 0.0
    %230 = vmatprep.subr.mxu0 0.0
    %231 = vmatpush2.msra.mxu0 0.0
    %232 = vmatprep.subr.mxu0 0.0
    %233 = vmatpush2.msra.mxu0 0.0
    %234 = vmatprep.subr.mxu0 0.0
    %235 = vmatpush2.msra.mxu0 0.0
    %236 = vmatprep.subr.mxu0 0.0
    %237 = vmatpush2.msra.mxu0 0.0
    %238 = vmatprep.subr.mxu0 0.0
    %239 = vmatpush2.msra.mxu0 0.0
    %240 = vmatprep.mubr.f32.mxu0 0.0
    %241 = vmatmul.mubr.f32.gmra.mxu0 %v87
    %v242 = vpop.f32.mrf.mxu0
    %v243 = vadd.f32 %v78, %v242
    %v244 = vpop.f32.mrf.mxu0
    %245 = vmatprep.mubr.f32.mxu0 0.0
    %246 = vmatmul.mubr.f32.gmra.mxu0 %v90
    %v247 = vpop.f32.mrf.mxu0
    %v248 = vadd.f32 %v78, %v247
    %v249 = vpop.f32.mrf.mxu0
    %250 = vdwg.mxu0
    %v251 = vld [vmem:[#allocation3] sm:$0xff]
    %v252 = vld [vmem:[#allocation3 + $0x8] sm:$0xff]
    %v253 = vld [vmem:[#allocation3 + $0x10] sm:$0xff]
    %v254 = vld [vmem:[#allocation3 + $0x18] sm:$0xff]
    %v255 = vld [vmem:[#allocation3 + $0x20] sm:$0xff]
    %v256 = vld [vmem:[#allocation3 + $0x28] sm:$0xff]
    %v257 = vld [vmem:[#allocation3 + $0x30] sm:$0xff]
    %v258 = vld [vmem:[#allocation3 + $0x38] sm:$0xff]
    %v259 = vld [vmem:[#allocation3 + $0x40] sm:$0xff]
    %v260 = vld [vmem:[#allocation3 + $0x48] sm:$0xff]
    %v261 = vld [vmem:[#allocation3 + $0x50] sm:$0xff]
    %v262 = vld [vmem:[#allocation3 + $0x58] sm:$0xff]
    %v263 = vld [vmem:[#allocation3 + $0x60] sm:$0xff]
    %v264 = vld [vmem:[#allocation3 + $0x68] sm:$0xff]
    %v265 = vld [vmem:[#allocation3 + $0x70] sm:$0xff]
    %v266 = vld [vmem:[#allocation3 + $0x78] sm:$0xff]
    %v267 = vld [vmem:[#allocation3 + $0x80] sm:$0xff]
    %v268 = vld [vmem:[#allocation3 + $0x88] sm:$0xff]
    %v269 = vld [vmem:[#allocation3 + $0x90] sm:$0xff]
    %v270 = vld [vmem:[#allocation3 + $0x98] sm:$0xff]
    %v271 = vld [vmem:[#allocation3 + $0xa0] sm:$0xff]
    %v272 = vld [vmem:[#allocation3 + $0xa8] sm:$0xff]
    %v273 = vld [vmem:[#allocation3 + $0xb0] sm:$0xff]
    %v274 = vld [vmem:[#allocation3 + $0xb8] sm:$0xff]
    %v275 = vld [vmem:[#allocation3 + $0xc0] sm:$0xff]
    %v276 = vld [vmem:[#allocation3 + $0xc8] sm:$0xff]
    %v277 = vld [vmem:[#allocation3 + $0xd0] sm:$0xff]
    %v278 = vld [vmem:[#allocation3 + $0xd8] sm:$0xff]
    %v279 = vld [vmem:[#allocation3 + $0xe0] sm:$0xff]
    %v280 = vld [vmem:[#allocation3 + $0xe8] sm:$0xff]
    %v281 = vld [vmem:[#allocation3 + $0xf0] sm:$0xff]
    %v282 = vld [vmem:[#allocation3 + $0xf8] sm:$0xff]
    %v283 = vld [vmem:[#allocation3 + $0x100] sm:$0xff]
    %v284 = vld [vmem:[#allocation3 + $0x108] sm:$0xff]
    %v285 = vld [vmem:[#allocation3 + $0x110] sm:$0xff]
    %v286 = vld [vmem:[#allocation3 + $0x118] sm:$0xff]
    %v287 = vld [vmem:[#allocation3 + $0x120] sm:$0xff]
    %v288 = vld [vmem:[#allocation3 + $0x128] sm:$0xff]
    %v289 = vld [vmem:[#allocation3 + $0x130] sm:$0xff]
    %v290 = vld [vmem:[#allocation3 + $0x138] sm:$0xff]
    %v291 = vld [vmem:[#allocation3 + $0x140] sm:$0xff]
    %v292 = vld [vmem:[#allocation3 + $0x148] sm:$0xff]
    %v293 = vld [vmem:[#allocation3 + $0x150] sm:$0xff]
    %v294 = vld [vmem:[#allocation3 + $0x158] sm:$0xff]
    %v295 = vld [vmem:[#allocation3 + $0x160] sm:$0xff]
    %v296 = vld [vmem:[#allocation3 + $0x168] sm:$0xff]
    %v297 = vld [vmem:[#allocation3 + $0x170] sm:$0xff]
    %v298 = vld [vmem:[#allocation3 + $0x178] sm:$0xff]
    %v299 = vld [vmem:[%s4] sm:$0x7]
    %v301 = vlaneseq
    %v302 = vshrl.u32 %v301, 7
    %v303 = vsub.s32 0, %v302
    %v304 = vrot.slane %v299, %v303
    %v305 = vlaneseq
    %v306 = vshrl.u32 %v305, 7
    %v307 = vsub.s32 1, %v306
    %v308 = vrot.slane %v299, %v307
    %v309 = vlaneseq
    %v310 = vshrl.u32 %v309, 7
    %v311 = vsub.s32 2, %v310
    %v312 = vrot.slane %v299, %v311
    %316 = vmatprep.subr.mxu0 %v297
    %317 = vmatpush1.msra.mxu0 %v296
    %318 = vmatprep.subr.mxu0 %v294
    %319 = vmatpush1.msra.mxu0 %v293
    %320 = vmatprep.subr.mxu0 %v291
    %321 = vmatpush1.msra.mxu0 %v290
    %322 = vmatprep.subr.mxu0 %v288
    %323 = vmatpush1.msra.mxu0 %v287
    %324 = vmatprep.subr.mxu0 %v285
    %325 = vmatpush1.msra.mxu0 %v284
    %326 = vmatprep.subr.mxu0 %v282
    %327 = vmatpush1.msra.mxu0 %v281
    %328 = vmatprep.subr.mxu0 %v279
    %329 = vmatpush1.msra.mxu0 %v278
    %330 = vmatprep.subr.mxu0 %v276
    %331 = vmatpush1.msra.mxu0 %v275
    %332 = vmatprep.subr.mxu0 %v273
    %333 = vmatpush1.msra.mxu0 %v272
    %334 = vmatprep.subr.mxu0 %v270
    %335 = vmatpush1.msra.mxu0 %v269
    %336 = vmatprep.subr.mxu0 %v267
    %337 = vmatpush1.msra.mxu0 %v266
    %338 = vmatprep.subr.mxu0 %v264
    %339 = vmatpush1.msra.mxu0 %v263
    %340 = vmatprep.subr.mxu0 %v261
    %341 = vmatpush1.msra.mxu0 %v260
    %342 = vmatprep.subr.mxu0 %v258
    %343 = vmatpush1.msra.mxu0 %v257
    %344 = vmatprep.subr.mxu0 %v255
    %345 = vmatpush1.msra.mxu0 %v254
    %346 = vmatprep.subr.mxu0 %v252
    %347 = vmatpush1.msra.mxu0 %v251
    %348 = vmatprep.subr.mxu0 0.0
    %349 = vmatpush2.msra.mxu0 0.0
    %350 = vmatprep.subr.mxu0 0.0
    %351 = vmatpush2.msra.mxu0 0.0
    %352 = vmatprep.subr.mxu0 0.0
    %353 = vmatpush2.msra.mxu0 0.0
    %354 = vmatprep.subr.mxu0 0.0
    %355 = vmatpush2.msra.mxu0 0.0
    %356 = vmatprep.subr.mxu0 0.0
    %357 = vmatpush2.msra.mxu0 0.0
    %358 = vmatprep.subr.mxu0 0.0
    %359 = vmatpush2.msra.mxu0 0.0
    %360 = vmatprep.subr.mxu0 0.0
    %361 = vmatpush2.msra.mxu0 0.0
    %362 = vmatprep.subr.mxu0 0.0
    %363 = vmatpush2.msra.mxu0 0.0
    %364 = vmatprep.subr.mxu0 0.0
    %365 = vmatpush2.msra.mxu0 0.0
    %366 = vmatprep.subr.mxu0 0.0
    %367 = vmatpush2.msra.mxu0 0.0
    %368 = vmatprep.subr.mxu0 0.0
    %369 = vmatpush2.msra.mxu0 0.0
    %370 = vmatprep.subr.mxu0 0.0
    %371 = vmatpush2.msra.mxu0 0.0
    %372 = vmatprep.subr.mxu0 0.0
    %373 = vmatpush2.msra.mxu0 0.0
    %374 = vmatprep.subr.mxu0 0.0
    %375 = vmatpush2.msra.mxu0 0.0
    %376 = vmatprep.subr.mxu0 0.0
    %377 = vmatpush2.msra.mxu0 0.0
    %378 = vmatprep.subr.mxu0 0.0
    %379 = vmatpush2.msra.mxu0 0.0
    %380 = vmatprep.mubr.f32.mxu0 0.0
    %381 = vmatmul.mubr.f32.gmra.mxu0 0.0
    %v382 = vpop.f32.mrf.mxu0
    %v383 = vadd.f32 %v304, %v382
    %v384 = vpop.f32.mrf.mxu0
    %v385 = vadd.f32 %v308, %v384
    %386 = vdwg.mxu0
    %387 = vmatprep.subr.mxu0 0.0
    %388 = vmatpush1.msra.mxu0 %v298
    %389 = vmatprep.subr.mxu0 0.0
    %390 = vmatpush1.msra.mxu0 %v295
    %391 = vmatprep.subr.mxu0 0.0
    %392 = vmatpush1.msra.mxu0 %v292
    %393 = vmatprep.subr.mxu0 0.0
    %394 = vmatpush1.msra.mxu0 %v289
    %395 = vmatprep.subr.mxu0 0.0
    %396 = vmatpush1.msra.mxu0 %v286
    %397 = vmatprep.subr.mxu0 0.0
    %398 = vmatpush1.msra.mxu0 %v283
    %399 = vmatprep.subr.mxu0 0.0
    %400 = vmatpush1.msra.mxu0 %v280
    %401 = vmatprep.subr.mxu0 0.0
    %402 = vmatpush1.msra.mxu0 %v277
    %403 = vmatprep.subr.mxu0 0.0
    %404 = vmatpush1.msra.mxu0 %v274
    %405 = vmatprep.subr.mxu0 0.0
    %406 = vmatpush1.msra.mxu0 %v271
    %407 = vmatprep.subr.mxu0 0.0
    %408 = vmatpush1.msra.mxu0 %v268
    %409 = vmatprep.subr.mxu0 0.0
    %410 = vmatpush1.msra.mxu0 %v265
    %411 = vmatprep.subr.mxu0 0.0
    %412 = vmatpush1.msra.mxu0 %v262
    %413 = vmatprep.subr.mxu0 0.0
    %414 = vmatpush1.msra.mxu0 %v259
    %415 = vmatprep.subr.mxu0 0.0
    %416 = vmatpush1.msra.mxu0 %v256
    %417 = vmatprep.subr.mxu0 0.0
    %418 = vmatpush1.msra.mxu0 %v253
    %419 = vmatprep.subr.mxu0 0.0
    %420 = vmatpush2.msra.mxu0 0.0
    %421 = vmatprep.subr.mxu0 0.0
    %422 = vmatpush2.msra.mxu0 0.0
    %423 = vmatprep.subr.mxu0 0.0
    %424 = vmatpush2.msra.mxu0 0.0
    %425 = vmatprep.subr.mxu0 0.0
    %426 = vmatpush2.msra.mxu0 0.0
    %427 = vmatprep.subr.mxu0 0.0
    %428 = vmatpush2.msra.mxu0 0.0
    %429 = vmatprep.subr.mxu0 0.0
    %430 = vmatpush2.msra.mxu0 0.0
    %431 = vmatprep.subr.mxu0 0.0
    %432 = vmatpush2.msra.mxu0 0.0
    %433 = vmatprep.subr.mxu0 0.0
    %434 = vmatpush2.msra.mxu0 0.0
    %435 = vmatprep.subr.mxu0 0.0
    %436 = vmatpush2.msra.mxu0 0.0
    %437 = vmatprep.subr.mxu0 0.0
    %438 = vmatpush2.msra.mxu0 0.0
    %439 = vmatprep.subr.mxu0 0.0
    %440 = vmatpush2.msra.mxu0 0.0
    %441 = vmatprep.subr.mxu0 0.0
    %442 = vmatpush2.msra.mxu0 0.0
    %443 = vmatprep.subr.mxu0 0.0
    %444 = vmatpush2.msra.mxu0 0.0
    %445 = vmatprep.subr.mxu0 0.0
    %446 = vmatpush2.msra.mxu0 0.0
    %447 = vmatprep.subr.mxu0 0.0
    %448 = vmatpush2.msra.mxu0 0.0
    %449 = vmatprep.subr.mxu0 0.0
    %450 = vmatpush2.msra.mxu0 0.0
    %451 = vmatprep.mubr.f32.mxu0 0.0
    %452 = vmatmul.mubr.f32.gmra.mxu0 0.0
    %v453 = vpop.f32.mrf.mxu0
    %v454 = vadd.f32 %v312, %v453
    %v455 = vpop.f32.mrf.mxu0
    %456 = vdwg.mxu0
    %v457 = vadd.f32 %v166, %v383
    %v458 = vadd.f32 %v168, %v385
    %v459 = vxor.u32 %v457, 2147483648
    %v460 = vxor.u32 %v458, 2147483648
    %v461 = vmul.f32 %v459, 1.442695
    %v462 = vpow.pop %v461
    %v463 = vmul.f32 %v460, 1.442695
    %v464 = vpow.pop %v463
    %v465 = vadd.f32 %v462, 1.0
    %v466 = vadd.f32 %v464, 1.0
    %v467 = vrcp.pop %v465
    %v468 = vmul.f32 1.0, %v467
    %v469 = vrcp.pop %v466
    %v470 = vmul.f32 1.0, %v469
    %v471 = vmul.f32 %v468, %v454
    %v472 = vadd.f32 %v243, %v471
    %v473 = vtanh.pop %v472
    %v474 = vsub.f32 0.0, %v473
    %v475 = vmul.f32 %v470, %v474
    %v476 = vadd.f32 %v473, %v475
    %477 = vmatprep.subr.mxu0 %v297
    %478 = vmatpush1.msra.mxu0 %v296
    %479 = vmatprep.subr.mxu0 %v294
    %480 = vmatpush1.msra.mxu0 %v293
    %481 = vmatprep.subr.mxu0 %v291
    %482 = vmatpush1.msra.mxu0 %v290
    %483 = vmatprep.subr.mxu0 %v288
    %484 = vmatpush1.msra.mxu0 %v287
    %485 = vmatprep.subr.mxu0 %v285
    %486 = vmatpush1.msra.mxu0 %v284
    %487 = vmatprep.subr.mxu0 %v282
    %488 = vmatpush1.msra.mxu0 %v281
    %489 = vmatprep.subr.mxu0 %v279
    %490 = vmatpush1.msra.mxu0 %v278
    %491 = vmatprep.subr.mxu0 %v276
    %492 = vmatpush1.msra.mxu0 %v275
    %493 = vmatprep.subr.mxu0 %v273
    %494 = vmatpush1.msra.mxu0 %v272
    %495 = vmatprep.subr.mxu0 %v270
    %496 = vmatpush1.msra.mxu0 %v269
    %497 = vmatprep.subr.mxu0 %v267
    %498 = vmatpush1.msra.mxu0 %v266
    %499 = vmatprep.subr.mxu0 %v264
    %500 = vmatpush1.msra.mxu0 %v263
    %501 = vmatprep.subr.mxu0 %v261
    %502 = vmatpush1.msra.mxu0 %v260
    %503 = vmatprep.subr.mxu0 %v258
    %504 = vmatpush1.msra.mxu0 %v257
    %505 = vmatprep.subr.mxu0 %v255
    %506 = vmatpush1.msra.mxu0 %v254
    %507 = vmatprep.subr.mxu0 %v252
    %508 = vmatpush1.msra.mxu0 %v251
    %509 = vmatprep.subr.mxu0 0.0
    %510 = vmatpush2.msra.mxu0 0.0
    %511 = vmatprep.subr.mxu0 0.0
    %512 = vmatpush2.msra.mxu0 0.0
    %513 = vmatprep.subr.mxu0 0.0
    %514 = vmatpush2.msra.mxu0 0.0
    %515 = vmatprep.subr.mxu0 0.0
    %516 = vmatpush2.msra.mxu0 0.0
    %517 = vmatprep.subr.mxu0 0.0
    %518 = vmatpush2.msra.mxu0 0.0
    %519 = vmatprep.subr.mxu0 0.0
    %520 = vmatpush2.msra.mxu0 0.0
    %521 = vmatprep.subr.mxu0 0.0
    %522 = vmatpush2.msra.mxu0 0.0
    %523 = vmatprep.subr.mxu0 0.0
    %524 = vmatpush2.msra.mxu0 0.0
    %525 = vmatprep.subr.mxu0 0.0
    %526 = vmatpush2.msra.mxu0 0.0
    %527 = vmatprep.subr.mxu0 0.0
    %528 = vmatpush2.msra.mxu0 0.0
    %529 = vmatprep.subr.mxu0 0.0
    %530 = vmatpush2.msra.mxu0 0.0
    %531 = vmatprep.subr.mxu0 0.0
    %532 = vmatpush2.msra.mxu0 0.0
    %533 = vmatprep.subr.mxu0 0.0
    %534 = vmatpush2.msra.mxu0 0.0
    %535 = vmatprep.subr.mxu0 0.0
    %536 = vmatpush2.msra.mxu0 0.0
    %537 = vmatprep.subr.mxu0 0.0
    %538 = vmatpush2.msra.mxu0 0.0
    %539 = vmatprep.subr.mxu0 0.0
    %540 = vmatpush2.msra.mxu0 0.0
    %541 = vmatprep.mubr.f32.mxu0 0.0
    %542 = vmatmul.mubr.f32.gmra.mxu0 %v476
    %v543 = vpop.f32.mrf.mxu0
    %v544 = vadd.f32 %v304, %v543
    %v545 = vpop.f32.mrf.mxu0
    %v546 = vadd.f32 %v308, %v545
    %547 = vdwg.mxu0
    %548 = vmatprep.subr.mxu0 0.0
    %549 = vmatpush1.msra.mxu0 %v298
    %550 = vmatprep.subr.mxu0 0.0
    %551 = vmatpush1.msra.mxu0 %v295
    %552 = vmatprep.subr.mxu0 0.0
    %553 = vmatpush1.msra.mxu0 %v292
    %554 = vmatprep.subr.mxu0 0.0
    %555 = vmatpush1.msra.mxu0 %v289
    %556 = vmatprep.subr.mxu0 0.0
    %557 = vmatpush1.msra.mxu0 %v286
    %558 = vmatprep.subr.mxu0 0.0
    %559 = vmatpush1.msra.mxu0 %v283
    %560 = vmatprep.subr.mxu0 0.0
    %561 = vmatpush1.msra.mxu0 %v280
    %562 = vmatprep.subr.mxu0 0.0
    %563 = vmatpush1.msra.mxu0 %v277
    %564 = vmatprep.subr.mxu0 0.0
    %565 = vmatpush1.msra.mxu0 %v274
    %566 = vmatprep.subr.mxu0 0.0
    %567 = vmatpush1.msra.mxu0 %v271
    %568 = vmatprep.subr.mxu0 0.0
    %569 = vmatpush1.msra.mxu0 %v268
    %570 = vmatprep.subr.mxu0 0.0
    %571 = vmatpush1.msra.mxu0 %v265
    %572 = vmatprep.subr.mxu0 0.0
    %573 = vmatpush1.msra.mxu0 %v262
    %574 = vmatprep.subr.mxu0 0.0
    %575 = vmatpush1.msra.mxu0 %v259
    %576 = vmatprep.subr.mxu0 0.0
    %577 = vmatpush1.msra.mxu0 %v256
    %578 = vmatprep.subr.mxu0 0.0
    %579 = vmatpush1.msra.mxu0 %v253
    %580 = vmatprep.subr.mxu0 0.0
    %581 = vmatpush2.msra.mxu0 0.0
    %582 = vmatprep.subr.mxu0 0.0
    %583 = vmatpush2.msra.mxu0 0.0
    %584 = vmatprep.subr.mxu0 0.0
    %585 = vmatpush2.msra.mxu0 0.0
    %586 = vmatprep.subr.mxu0 0.0
    %587 = vmatpush2.msra.mxu0 0.0
    %588 = vmatprep.subr.mxu0 0.0
    %589 = vmatpush2.msra.mxu0 0.0
    %590 = vmatprep.subr.mxu0 0.0
    %591 = vmatpush2.msra.mxu0 0.0
    %592 = vmatprep.subr.mxu0 0.0
    %593 = vmatpush2.msra.mxu0 0.0
    %594 = vmatprep.subr.mxu0 0.0
    %595 = vmatpush2.msra.mxu0 0.0
    %596 = vmatprep.subr.mxu0 0.0
    %597 = vmatpush2.msra.mxu0 0.0
    %598 = vmatprep.subr.mxu0 0.0
    %599 = vmatpush2.msra.mxu0 0.0
    %600 = vmatprep.subr.mxu0 0.0
    %601 = vmatpush2.msra.mxu0 0.0
    %602 = vmatprep.subr.mxu0 0.0
    %603 = vmatpush2.msra.mxu0 0.0
    %604 = vmatprep.subr.mxu0 0.0
    %605 = vmatpush2.msra.mxu0 0.0
    %606 = vmatprep.subr.mxu0 0.0
    %607 = vmatpush2.msra.mxu0 0.0
    %608 = vmatprep.subr.mxu0 0.0
    %609 = vmatpush2.msra.mxu0 0.0
    %610 = vmatprep.subr.mxu0 0.0
    %611 = vmatpush2.msra.mxu0 0.0
    %612 = vmatprep.mubr.f32.mxu0 0.0
    %613 = vmatmul.mubr.f32.gmra.mxu0 %v476
    %v614 = vpop.f32.mrf.mxu0
    %v615 = vadd.f32 %v312, %v614
    %v616 = vpop.f32.mrf.mxu0
    %617 = vdwg.mxu0
    %v620 = vrot.slane %v544, 6
    %v621 = vrot.slane %v546, 6
    %v624 = vadd.f32 %v166, %v620
    %v625 = vadd.f32 %v168, %v621
    %v626 = vxor.u32 %v624, 2147483648
    %v627 = vxor.u32 %v625, 2147483648
    %v628 = vmul.f32 %v626, 1.442695
    %v629 = vpow.pop %v628
    %v630 = vmul.f32 %v627, 1.442695
    %v631 = vpow.pop %v630
    %v632 = vadd.f32 %v629, 1.0
    %v633 = vadd.f32 %v631, 1.0
    %v634 = vrcp.pop %v632
    %v635 = vmul.f32 1.0, %v634
    %v636 = vrcp.pop %v633
    %v637 = vmul.f32 1.0, %v636
    %v639 = vrot.slane %v615, 6
    %v641 = vmul.f32 %v635, %v639
    %v642 = vadd.f32 %v243, %v641
    %v643 = vtanh.pop %v642
    %v645 = vrot.slane %v643, 2
    %v647 = vsub.f32 %v476, %v645
    %v649 = vrot.slane %v647, 6
    %v651 = vmul.f32 %v637, %v649
    %v652 = vadd.f32 %v643, %v651
    %v654 = vrot.slane %v652, 2
    %656 = vmatprep.subr.mxu0 %v297
    %657 = vmatpush1.msra.mxu0 %v296
    %658 = vmatprep.subr.mxu0 %v294
    %659 = vmatpush1.msra.mxu0 %v293
    %660 = vmatprep.subr.mxu0 %v291
    %661 = vmatpush1.msra.mxu0 %v290
    %662 = vmatprep.subr.mxu0 %v288
    %663 = vmatpush1.msra.mxu0 %v287
    %664 = vmatprep.subr.mxu0 %v285
    %665 = vmatpush1.msra.mxu0 %v284
    %666 = vmatprep.subr.mxu0 %v282
    %667 = vmatpush1.msra.mxu0 %v281
    %668 = vmatprep.subr.mxu0 %v279
    %669 = vmatpush1.msra.mxu0 %v278
    %670 = vmatprep.subr.mxu0 %v276
    %671 = vmatpush1.msra.mxu0 %v275
    %672 = vmatprep.subr.mxu0 %v273
    %673 = vmatpush1.msra.mxu0 %v272
    %674 = vmatprep.subr.mxu0 %v270
    %675 = vmatpush1.msra.mxu0 %v269
    %676 = vmatprep.subr.mxu0 %v267
    %677 = vmatpush1.msra.mxu0 %v266
    %678 = vmatprep.subr.mxu0 %v264
    %679 = vmatpush1.msra.mxu0 %v263
    %680 = vmatprep.subr.mxu0 %v261
    %681 = vmatpush1.msra.mxu0 %v260
    %682 = vmatprep.subr.mxu0 %v258
    %683 = vmatpush1.msra.mxu0 %v257
    %684 = vmatprep.subr.mxu0 %v255
    %685 = vmatpush1.msra.mxu0 %v254
    %686 = vmatprep.subr.mxu0 %v252
    %687 = vmatpush1.msra.mxu0 %v251
    %688 = vmatprep.subr.mxu0 0.0
    %689 = vmatpush2.msra.mxu0 0.0
    %690 = vmatprep.subr.mxu0 0.0
    %691 = vmatpush2.msra.mxu0 0.0
    %692 = vmatprep.subr.mxu0 0.0
    %693 = vmatpush2.msra.mxu0 0.0
    %694 = vmatprep.subr.mxu0 0.0
    %695 = vmatpush2.msra.mxu0 0.0
    %696 = vmatprep.subr.mxu0 0.0
    %697 = vmatpush2.msra.mxu0 0.0
    %698 = vmatprep.subr.mxu0 0.0
    %699 = vmatpush2.msra.mxu0 0.0
    %700 = vmatprep.subr.mxu0 0.0
    %701 = vmatpush2.msra.mxu0 0.0
    %702 = vmatprep.subr.mxu0 0.0
    %703 = vmatpush2.msra.mxu0 0.0
    %704 = vmatprep.subr.mxu0 0.0
    %705 = vmatpush2.msra.mxu0 0.0
    %706 = vmatprep.subr.mxu0 0.0
    %707 = vmatpush2.msra.mxu0 0.0
    %708 = vmatprep.subr.mxu0 0.0
    %709 = vmatpush2.msra.mxu0 0.0
    %710 = vmatprep.subr.mxu0 0.0
    %711 = vmatpush2.msra.mxu0 0.0
    %712 = vmatprep.subr.mxu0 0.0
    %713 = vmatpush2.msra.mxu0 0.0
    %714 = vmatprep.subr.mxu0 0.0
    %715 = vmatpush2.msra.mxu0 0.0
    %716 = vmatprep.subr.mxu0 0.0
    %717 = vmatpush2.msra.mxu0 0.0
    %718 = vmatprep.subr.mxu0 0.0
    %719 = vmatpush2.msra.mxu0 0.0
    %720 = vmatprep.mubr.f32.mxu0 0.0
    %721 = vmatmul.mubr.f32.gmra.mxu0 %v654
    %v722 = vpop.f32.mrf.mxu0
    %v723 = vadd.f32 %v304, %v722
    %v724 = vpop.f32.mrf.mxu0
    %v725 = vadd.f32 %v308, %v724
    %726 = vdwg.mxu0
    %727 = vmatprep.subr.mxu0 0.0
    %728 = vmatpush1.msra.mxu0 %v298
    %729 = vmatprep.subr.mxu0 0.0
    %730 = vmatpush1.msra.mxu0 %v295
    %731 = vmatprep.subr.mxu0 0.0
    %732 = vmatpush1.msra.mxu0 %v292
    %733 = vmatprep.subr.mxu0 0.0
    %734 = vmatpush1.msra.mxu0 %v289
    %735 = vmatprep.subr.mxu0 0.0
    %736 = vmatpush1.msra.mxu0 %v286
    %737 = vmatprep.subr.mxu0 0.0
    %738 = vmatpush1.msra.mxu0 %v283
    %739 = vmatprep.subr.mxu0 0.0
    %740 = vmatpush1.msra.mxu0 %v280
    %741 = vmatprep.subr.mxu0 0.0
    %742 = vmatpush1.msra.mxu0 %v277
    %743 = vmatprep.subr.mxu0 0.0
    %744 = vmatpush1.msra.mxu0 %v274
    %745 = vmatprep.subr.mxu0 0.0
    %746 = vmatpush1.msra.mxu0 %v271
    %747 = vmatprep.subr.mxu0 0.0
    %748 = vmatpush1.msra.mxu0 %v268
    %749 = vmatprep.subr.mxu0 0.0
    %750 = vmatpush1.msra.mxu0 %v265
    %751 = vmatprep.subr.mxu0 0.0
    %752 = vmatpush1.msra.mxu0 %v262
    %753 = vmatprep.subr.mxu0 0.0
    %754 = vmatpush1.msra.mxu0 %v259
    %755 = vmatprep.subr.mxu0 0.0
    %756 = vmatpush1.msra.mxu0 %v256
    %757 = vmatprep.subr.mxu0 0.0
    %758 = vmatpush1.msra.mxu0 %v253
    %759 = vmatprep.subr.mxu0 0.0
    %760 = vmatpush2.msra.mxu0 0.0
    %761 = vmatprep.subr.mxu0 0.0
    %762 = vmatpush2.msra.mxu0 0.0
    %763 = vmatprep.subr.mxu0 0.0
    %764 = vmatpush2.msra.mxu0 0.0
    %765 = vmatprep.subr.mxu0 0.0
    %766 = vmatpush2.msra.mxu0 0.0
    %767 = vmatprep.subr.mxu0 0.0
    %768 = vmatpush2.msra.mxu0 0.0
    %769 = vmatprep.subr.mxu0 0.0
    %770 = vmatpush2.msra.mxu0 0.0
    %771 = vmatprep.subr.mxu0 0.0
    %772 = vmatpush2.msra.mxu0 0.0
    %773 = vmatprep.subr.mxu0 0.0
    %774 = vmatpush2.msra.mxu0 0.0
    %775 = vmatprep.subr.mxu0 0.0
    %776 = vmatpush2.msra.mxu0 0.0
    %777 = vmatprep.subr.mxu0 0.0
    %778 = vmatpush2.msra.mxu0 0.0
    %779 = vmatprep.subr.mxu0 0.0
    %780 = vmatpush2.msra.mxu0 0.0
    %781 = vmatprep.subr.mxu0 0.0
    %782 = vmatpush2.msra.mxu0 0.0
    %783 = vmatprep.subr.mxu0 0.0
    %784 = vmatpush2.msra.mxu0 0.0
    %785 = vmatprep.subr.mxu0 0.0
    %786 = vmatpush2.msra.mxu0 0.0
    %787 = vmatprep.subr.mxu0 0.0
    %788 = vmatpush2.msra.mxu0 0.0
    %789 = vmatprep.subr.mxu0 0.0
    %790 = vmatpush2.msra.mxu0 0.0
    %791 = vmatprep.mubr.f32.mxu0 0.0
    %792 = vmatmul.mubr.f32.gmra.mxu0 %v654
    %v793 = vpop.f32.mrf.mxu0
    %v794 = vadd.f32 %v312, %v793
    %v795 = vpop.f32.mrf.mxu0
    %796 = vdwg.mxu0
    %v799 = vrot.slane %v723, 4
    %v800 = vrot.slane %v725, 4
    %v803 = vadd.f32 %v166, %v799
    %v804 = vadd.f32 %v168, %v800
    %v805 = vxor.u32 %v803, 2147483648
    %v806 = vxor.u32 %v804, 2147483648
    %v807 = vmul.f32 %v805, 1.442695
    %v808 = vpow.pop %v807
    %v809 = vmul.f32 %v806, 1.442695
    %v810 = vpow.pop %v809
    %v811 = vadd.f32 %v808, 1.0
    %v812 = vadd.f32 %v810, 1.0
    %v813 = vrcp.pop %v811
    %v814 = vmul.f32 1.0, %v813
    %v815 = vrcp.pop %v812
    %v816 = vmul.f32 1.0, %v815
    %v818 = vrot.slane %v794, 4
    %v820 = vmul.f32 %v814, %v818
    %v821 = vadd.f32 %v243, %v820
    %v822 = vtanh.pop %v821
    %v824 = vrot.slane %v822, 2
    %v826 = vsub.f32 %v652, %v824
    %v828 = vrot.slane %v826, 6
    %v830 = vmul.f32 %v816, %v828
    %v831 = vadd.f32 %v822, %v830
    %v833 = vrot.slane %v831, 4
    %835 = vmatprep.subr.mxu0 %v297
    %836 = vmatpush1.msra.mxu0 %v296
    %837 = vmatprep.subr.mxu0 %v294
    %838 = vmatpush1.msra.mxu0 %v293
    %839 = vmatprep.subr.mxu0 %v291
    %840 = vmatpush1.msra.mxu0 %v290
    %841 = vmatprep.subr.mxu0 %v288
    %842 = vmatpush1.msra.mxu0 %v287
    %843 = vmatprep.subr.mxu0 %v285
    %844 = vmatpush1.msra.mxu0 %v284
    %845 = vmatprep.subr.mxu0 %v282
    %846 = vmatpush1.msra.mxu0 %v281
    %847 = vmatprep.subr.mxu0 %v279
    %848 = vmatpush1.msra.mxu0 %v278
    %849 = vmatprep.subr.mxu0 %v276
    %850 = vmatpush1.msra.mxu0 %v275
    %851 = vmatprep.subr.mxu0 %v273
    %852 = vmatpush1.msra.mxu0 %v272
    %853 = vmatprep.subr.mxu0 %v270
    %854 = vmatpush1.msra.mxu0 %v269
    %855 = vmatprep.subr.mxu0 %v267
    %856 = vmatpush1.msra.mxu0 %v266
    %857 = vmatprep.subr.mxu0 %v264
    %858 = vmatpush1.msra.mxu0 %v263
    %859 = vmatprep.subr.mxu0 %v261
    %860 = vmatpush1.msra.mxu0 %v260
    %861 = vmatprep.subr.mxu0 %v258
    %862 = vmatpush1.msra.mxu0 %v257
    %863 = vmatprep.subr.mxu0 %v255
    %864 = vmatpush1.msra.mxu0 %v254
    %865 = vmatprep.subr.mxu0 %v252
    %866 = vmatpush1.msra.mxu0 %v251
    %867 = vmatprep.subr.mxu0 0.0
    %868 = vmatpush2.msra.mxu0 0.0
    %869 = vmatprep.subr.mxu0 0.0
    %870 = vmatpush2.msra.mxu0 0.0
    %871 = vmatprep.subr.mxu0 0.0
    %872 = vmatpush2.msra.mxu0 0.0
    %873 = vmatprep.subr.mxu0 0.0
    %874 = vmatpush2.msra.mxu0 0.0
    %875 = vmatprep.subr.mxu0 0.0
    %876 = vmatpush2.msra.mxu0 0.0
    %877 = vmatprep.subr.mxu0 0.0
    %878 = vmatpush2.msra.mxu0 0.0
    %879 = vmatprep.subr.mxu0 0.0
    %880 = vmatpush2.msra.mxu0 0.0
    %881 = vmatprep.subr.mxu0 0.0
    %882 = vmatpush2.msra.mxu0 0.0
    %883 = vmatprep.subr.mxu0 0.0
    %884 = vmatpush2.msra.mxu0 0.0
    %885 = vmatprep.subr.mxu0 0.0
    %886 = vmatpush2.msra.mxu0 0.0
    %887 = vmatprep.subr.mxu0 0.0
    %888 = vmatpush2.msra.mxu0 0.0
    %889 = vmatprep.subr.mxu0 0.0
    %890 = vmatpush2.msra.mxu0 0.0
    %891 = vmatprep.subr.mxu0 0.0
    %892 = vmatpush2.msra.mxu0 0.0
    %893 = vmatprep.subr.mxu0 0.0
    %894 = vmatpush2.msra.mxu0 0.0
    %895 = vmatprep.subr.mxu0 0.0
    %896 = vmatpush2.msra.mxu0 0.0
    %897 = vmatprep.subr.mxu0 0.0
    %898 = vmatpush2.msra.mxu0 0.0
    %899 = vmatprep.mubr.f32.mxu0 0.0
    %900 = vmatmul.mubr.f32.gmra.mxu0 %v833
    %v901 = vpop.f32.mrf.mxu0
    %v902 = vadd.f32 %v304, %v901
    %v903 = vpop.f32.mrf.mxu0
    %v904 = vadd.f32 %v308, %v903
    %905 = vdwg.mxu0
    %906 = vmatprep.subr.mxu0 0.0
    %907 = vmatpush1.msra.mxu0 %v298
    %908 = vmatprep.subr.mxu0 0.0
    %909 = vmatpush1.msra.mxu0 %v295
    %910 = vmatprep.subr.mxu0 0.0
    %911 = vmatpush1.msra.mxu0 %v292
    %912 = vmatprep.subr.mxu0 0.0
    %913 = vmatpush1.msra.mxu0 %v289
    %914 = vmatprep.subr.mxu0 0.0
    %915 = vmatpush1.msra.mxu0 %v286
    %916 = vmatprep.subr.mxu0 0.0
    %917 = vmatpush1.msra.mxu0 %v283
    %918 = vmatprep.subr.mxu0 0.0
    %919 = vmatpush1.msra.mxu0 %v280
    %920 = vmatprep.subr.mxu0 0.0
    %921 = vmatpush1.msra.mxu0 %v277
    %922 = vmatprep.subr.mxu0 0.0
    %923 = vmatpush1.msra.mxu0 %v274
    %924 = vmatprep.subr.mxu0 0.0
    %925 = vmatpush1.msra.mxu0 %v271
    %926 = vmatprep.subr.mxu0 0.0
    %927 = vmatpush1.msra.mxu0 %v268
    %928 = vmatprep.subr.mxu0 0.0
    %929 = vmatpush1.msra.mxu0 %v265
    %930 = vmatprep.subr.mxu0 0.0
    %931 = vmatpush1.msra.mxu0 %v262
    %932 = vmatprep.subr.mxu0 0.0
    %933 = vmatpush1.msra.mxu0 %v259
    %934 = vmatprep.subr.mxu0 0.0
    %935 = vmatpush1.msra.mxu0 %v256
    %936 = vmatprep.subr.mxu0 0.0
    %937 = vmatpush1.msra.mxu0 %v253
    %938 = vmatprep.subr.mxu0 0.0
    %939 = vmatpush2.msra.mxu0 0.0
    %940 = vmatprep.subr.mxu0 0.0
    %941 = vmatpush2.msra.mxu0 0.0
    %942 = vmatprep.subr.mxu0 0.0
    %943 = vmatpush2.msra.mxu0 0.0
    %944 = vmatprep.subr.mxu0 0.0
    %945 = vmatpush2.msra.mxu0 0.0
    %946 = vmatprep.subr.mxu0 0.0
    %947 = vmatpush2.msra.mxu0 0.0
    %948 = vmatprep.subr.mxu0 0.0
    %949 = vmatpush2.msra.mxu0 0.0
    %950 = vmatprep.subr.mxu0 0.0
    %951 = vmatpush2.msra.mxu0 0.0
    %952 = vmatprep.subr.mxu0 0.0
    %953 = vmatpush2.msra.mxu0 0.0
    %954 = vmatprep.subr.mxu0 0.0
    %955 = vmatpush2.msra.mxu0 0.0
    %956 = vmatprep.subr.mxu0 0.0
    %957 = vmatpush2.msra.mxu0 0.0
    %958 = vmatprep.subr.mxu0 0.0
    %959 = vmatpush2.msra.mxu0 0.0
    %960 = vmatprep.subr.mxu0 0.0
    %961 = vmatpush2.msra.mxu0 0.0
    %962 = vmatprep.subr.mxu0 0.0
    %963 = vmatpush2.msra.mxu0 0.0
    %964 = vmatprep.subr.mxu0 0.0
    %965 = vmatpush2.msra.mxu0 0.0
    %966 = vmatprep.subr.mxu0 0.0
    %967 = vmatpush2.msra.mxu0 0.0
    %968 = vmatprep.subr.mxu0 0.0
    %969 = vmatpush2.msra.mxu0 0.0
    %970 = vmatprep.mubr.f32.mxu0 0.0
    %971 = vmatmul.mubr.f32.gmra.mxu0 %v833
    %v972 = vpop.f32.mrf.mxu0
    %v973 = vadd.f32 %v312, %v972
    %v974 = vpop.f32.mrf.mxu0
    %975 = vdwg.mxu0
    %v978 = vrot.slane %v902, 2
    %v979 = vrot.slane %v904, 2
    %v982 = vadd.f32 %v166, %v978
    %v983 = vadd.f32 %v168, %v979
    %v984 = vxor.u32 %v982, 2147483648
    %v985 = vxor.u32 %v983, 2147483648
    %v986 = vmul.f32 %v984, 1.442695
    %v987 = vpow.pop %v986
    %v988 = vmul.f32 %v985, 1.442695
    %v989 = vpow.pop %v988
    %v990 = vadd.f32 %v987, 1.0
    %v991 = vadd.f32 %v989, 1.0
    %v992 = vrcp.pop %v990
    %v993 = vmul.f32 1.0, %v992
    %v994 = vrcp.pop %v991
    %v995 = vmul.f32 1.0, %v994
    %v997 = vrot.slane %v973, 2
    %v999 = vmul.f32 %v993, %v997
    %v1000 = vadd.f32 %v243, %v999
    %v1001 = vtanh.pop %v1000
    %v1003 = vrot.slane %v1001, 2
    %v1005 = vsub.f32 %v831, %v1003
    %v1007 = vrot.slane %v1005, 6
    %v1009 = vmul.f32 %v995, %v1007
    %v1010 = vadd.f32 %v1001, %v1009
    %v1012 = vrot.slane %v1010, 6
    %1014 = vmatprep.subr.mxu0 %v297
    %1015 = vmatpush1.msra.mxu0 %v296
    %1016 = vmatprep.subr.mxu0 %v294
    %1017 = vmatpush1.msra.mxu0 %v293
    %1018 = vmatprep.subr.mxu0 %v291
    %1019 = vmatpush1.msra.mxu0 %v290
    %1020 = vmatprep.subr.mxu0 %v288
    %1021 = vmatpush1.msra.mxu0 %v287
    %1022 = vmatprep.subr.mxu0 %v285
    %1023 = vmatpush1.msra.mxu0 %v284
    %1024 = vmatprep.subr.mxu0 %v282
    %1025 = vmatpush1.msra.mxu0 %v281
    %1026 = vmatprep.subr.mxu0 %v279
    %1027 = vmatpush1.msra.mxu0 %v278
    %1028 = vmatprep.subr.mxu0 %v276
    %1029 = vmatpush1.msra.mxu0 %v275
    %1030 = vmatprep.subr.mxu0 %v273
    %1031 = vmatpush1.msra.mxu0 %v272
    %1032 = vmatprep.subr.mxu0 %v270
    %1033 = vmatpush1.msra.mxu0 %v269
    %1034 = vmatprep.subr.mxu0 %v267
    %1035 = vmatpush1.msra.mxu0 %v266
    %1036 = vmatprep.subr.mxu0 %v264
    %1037 = vmatpush1.msra.mxu0 %v263
    %1038 = vmatprep.subr.mxu0 %v261
    %1039 = vmatpush1.msra.mxu0 %v260
    %1040 = vmatprep.subr.mxu0 %v258
    %1041 = vmatpush1.msra.mxu0 %v257
    %1042 = vmatprep.subr.mxu0 %v255
    %1043 = vmatpush1.msra.mxu0 %v254
    %1044 = vmatprep.subr.mxu0 %v252
    %1045 = vmatpush1.msra.mxu0 %v251
    %1046 = vmatprep.subr.mxu0 0.0
    %1047 = vmatpush2.msra.mxu0 0.0
    %1048 = vmatprep.subr.mxu0 0.0
    %1049 = vmatpush2.msra.mxu0 0.0
    %1050 = vmatprep.subr.mxu0 0.0
    %1051 = vmatpush2.msra.mxu0 0.0
    %1052 = vmatprep.subr.mxu0 0.0
    %1053 = vmatpush2.msra.mxu0 0.0
    %1054 = vmatprep.subr.mxu0 0.0
    %1055 = vmatpush2.msra.mxu0 0.0
    %1056 = vmatprep.subr.mxu0 0.0
    %1057 = vmatpush2.msra.mxu0 0.0
    %1058 = vmatprep.subr.mxu0 0.0
    %1059 = vmatpush2.msra.mxu0 0.0
    %1060 = vmatprep.subr.mxu0 0.0
    %1061 = vmatpush2.msra.mxu0 0.0
    %1062 = vmatprep.subr.mxu0 0.0
    %1063 = vmatpush2.msra.mxu0 0.0
    %1064 = vmatprep.subr.mxu0 0.0
    %1065 = vmatpush2.msra.mxu0 0.0
    %1066 = vmatprep.subr.mxu0 0.0
    %1067 = vmatpush2.msra.mxu0 0.0
    %1068 = vmatprep.subr.mxu0 0.0
    %1069 = vmatpush2.msra.mxu0 0.0
    %1070 = vmatprep.subr.mxu0 0.0
    %1071 = vmatpush2.msra.mxu0 0.0
    %1072 = vmatprep.subr.mxu0 0.0
    %1073 = vmatpush2.msra.mxu0 0.0
    %1074 = vmatprep.subr.mxu0 0.0
    %1075 = vmatpush2.msra.mxu0 0.0
    %1076 = vmatprep.subr.mxu0 0.0
    %1077 = vmatpush2.msra.mxu0 0.0
    %1078 = vmatprep.mubr.f32.mxu0 0.0
    %1079 = vmatmul.mubr.f32.gmra.mxu0 %v1012
    %v1080 = vpop.f32.mrf.mxu0
    %v1081 = vadd.f32 %v304, %v1080
    %v1082 = vpop.f32.mrf.mxu0
    %v1083 = vadd.f32 %v308, %v1082
    %1084 = vdwg.mxu0
    %1085 = vmatprep.subr.mxu0 0.0
    %1086 = vmatpush1.msra.mxu0 %v298
    %1087 = vmatprep.subr.mxu0 0.0
    %1088 = vmatpush1.msra.mxu0 %v295
    %1089 = vmatprep.subr.mxu0 0.0
    %1090 = vmatpush1.msra.mxu0 %v292
    %1091 = vmatprep.subr.mxu0 0.0
    %1092 = vmatpush1.msra.mxu0 %v289
    %1093 = vmatprep.subr.mxu0 0.0
    %1094 = vmatpush1.msra.mxu0 %v286
    %1095 = vmatprep.subr.mxu0 0.0
    %1096 = vmatpush1.msra.mxu0 %v283
    %1097 = vmatprep.subr.mxu0 0.0
    %1098 = vmatpush1.msra.mxu0 %v280
    %1099 = vmatprep.subr.mxu0 0.0
    %1100 = vmatpush1.msra.mxu0 %v277
    %1101 = vmatprep.subr.mxu0 0.0
    %1102 = vmatpush1.msra.mxu0 %v274
    %1103 = vmatprep.subr.mxu0 0.0
    %1104 = vmatpush1.msra.mxu0 %v271
    %1105 = vmatprep.subr.mxu0 0.0
    %1106 = vmatpush1.msra.mxu0 %v268
    %1107 = vmatprep.subr.mxu0 0.0
    %1108 = vmatpush1.msra.mxu0 %v265
    %1109 = vmatprep.subr.mxu0 0.0
    %1110 = vmatpush1.msra.mxu0 %v262
    %1111 = vmatprep.subr.mxu0 0.0
    %1112 = vmatpush1.msra.mxu0 %v259
    %1113 = vmatprep.subr.mxu0 0.0
    %1114 = vmatpush1.msra.mxu0 %v256
    %1115 = vmatprep.subr.mxu0 0.0
    %1116 = vmatpush1.msra.mxu0 %v253
    %1117 = vmatprep.subr.mxu0 0.0
    %1118 = vmatpush2.msra.mxu0 0.0
    %1119 = vmatprep.subr.mxu0 0.0
    %1120 = vmatpush2.msra.mxu0 0.0
    %1121 = vmatprep.subr.mxu0 0.0
    %1122 = vmatpush2.msra.mxu0 0.0
    %1123 = vmatprep.subr.mxu0 0.0
    %1124 = vmatpush2.msra.mxu0 0.0
    %1125 = vmatprep.subr.mxu0 0.0
    %1126 = vmatpush2.msra.mxu0 0.0
    %1127 = vmatprep.subr.mxu0 0.0
    %1128 = vmatpush2.msra.mxu0 0.0
    %1129 = vmatprep.subr.mxu0 0.0
    %1130 = vmatpush2.msra.mxu0 0.0
    %1131 = vmatprep.subr.mxu0 0.0
    %1132 = vmatpush2.msra.mxu0 0.0
    %1133 = vmatprep.subr.mxu0 0.0
    %1134 = vmatpush2.msra.mxu0 0.0
    %1135 = vmatprep.subr.mxu0 0.0
    %1136 = vmatpush2.msra.mxu0 0.0
    %1137 = vmatprep.subr.mxu0 0.0
    %1138 = vmatpush2.msra.mxu0 0.0
    %1139 = vmatprep.subr.mxu0 0.0
    %1140 = vmatpush2.msra.mxu0 0.0
    %1141 = vmatprep.subr.mxu0 0.0
    %1142 = vmatpush2.msra.mxu0 0.0
    %1143 = vmatprep.subr.mxu0 0.0
    %1144 = vmatpush2.msra.mxu0 0.0
    %1145 = vmatprep.subr.mxu0 0.0
    %1146 = vmatpush2.msra.mxu0 0.0
    %1147 = vmatprep.subr.mxu0 0.0
    %1148 = vmatpush2.msra.mxu0 0.0
    %1149 = vmatprep.mubr.f32.mxu0 0.0
    %1150 = vmatmul.mubr.f32.gmra.mxu0 %v1012
    %v1151 = vpop.f32.mrf.mxu0
    %v1152 = vadd.f32 %v312, %v1151
    %v1153 = vpop.f32.mrf.mxu0
    %1154 = vdwg.mxu0
    %v1155 = vadd.f32 %v172, %v1081
    %v1156 = vadd.f32 %v174, %v1083
    %v1157 = vxor.u32 %v1155, 2147483648
    %v1158 = vxor.u32 %v1156, 2147483648
    %v1159 = vmul.f32 %v1157, 1.442695
    %v1160 = vpow.pop %v1159
    %v1161 = vmul.f32 %v1158, 1.442695
    %v1162 = vpow.pop %v1161
    %v1163 = vadd.f32 %v1160, 1.0
    %v1164 = vadd.f32 %v1162, 1.0
    %v1165 = vrcp.pop %v1163
    %v1166 = vmul.f32 1.0, %v1165
    %v1167 = vrcp.pop %v1164
    %v1168 = vmul.f32 1.0, %v1167
    %v1169 = vmul.f32 %v1166, %v1152
    %v1170 = vadd.f32 %v248, %v1169
    %v1171 = vtanh.pop %v1170
    %v1173 = vrot.slane %v1171, 2
    %v1175 = vsub.f32 %v1010, %v1173
    %v1177 = vrot.slane %v1175, 6
    %v1179 = vmul.f32 %v1168, %v1177
    %v1180 = vadd.f32 %v1171, %v1179
    %1181 = vmatprep.subr.mxu0 %v297
    %1182 = vmatpush1.msra.mxu0 %v296
    %1183 = vmatprep.subr.mxu0 %v294
    %1184 = vmatpush1.msra.mxu0 %v293
    %1185 = vmatprep.subr.mxu0 %v291
    %1186 = vmatpush1.msra.mxu0 %v290
    %1187 = vmatprep.subr.mxu0 %v288
    %1188 = vmatpush1.msra.mxu0 %v287
    %1189 = vmatprep.subr.mxu0 %v285
    %1190 = vmatpush1.msra.mxu0 %v284
    %1191 = vmatprep.subr.mxu0 %v282
    %1192 = vmatpush1.msra.mxu0 %v281
    %1193 = vmatprep.subr.mxu0 %v279
    %1194 = vmatpush1.msra.mxu0 %v278
    %1195 = vmatprep.subr.mxu0 %v276
    %1196 = vmatpush1.msra.mxu0 %v275
    %1197 = vmatprep.subr.mxu0 %v273
    %1198 = vmatpush1.msra.mxu0 %v272
    %1199 = vmatprep.subr.mxu0 %v270
    %1200 = vmatpush1.msra.mxu0 %v269
    %1201 = vmatprep.subr.mxu0 %v267
    %1202 = vmatpush1.msra.mxu0 %v266
    %1203 = vmatprep.subr.mxu0 %v264
    %1204 = vmatpush1.msra.mxu0 %v263
    %1205 = vmatprep.subr.mxu0 %v261
    %1206 = vmatpush1.msra.mxu0 %v260
    %1207 = vmatprep.subr.mxu0 %v258
    %1208 = vmatpush1.msra.mxu0 %v257
    %1209 = vmatprep.subr.mxu0 %v255
    %1210 = vmatpush1.msra.mxu0 %v254
    %1211 = vmatprep.subr.mxu0 %v252
    %1212 = vmatpush1.msra.mxu0 %v251
    %1213 = vmatprep.subr.mxu0 0.0
    %1214 = vmatpush2.msra.mxu0 0.0
    %1215 = vmatprep.subr.mxu0 0.0
    %1216 = vmatpush2.msra.mxu0 0.0
    %1217 = vmatprep.subr.mxu0 0.0
    %1218 = vmatpush2.msra.mxu0 0.0
    %1219 = vmatprep.subr.mxu0 0.0
    %1220 = vmatpush2.msra.mxu0 0.0
    %1221 = vmatprep.subr.mxu0 0.0
    %1222 = vmatpush2.msra.mxu0 0.0
    %1223 = vmatprep.subr.mxu0 0.0
    %1224 = vmatpush2.msra.mxu0 0.0
    %1225 = vmatprep.subr.mxu0 0.0
    %1226 = vmatpush2.msra.mxu0 0.0
    %1227 = vmatprep.subr.mxu0 0.0
    %1228 = vmatpush2.msra.mxu0 0.0
    %1229 = vmatprep.subr.mxu0 0.0
    %1230 = vmatpush2.msra.mxu0 0.0
    %1231 = vmatprep.subr.mxu0 0.0
    %1232 = vmatpush2.msra.mxu0 0.0
    %1233 = vmatprep.subr.mxu0 0.0
    %1234 = vmatpush2.msra.mxu0 0.0
    %1235 = vmatprep.subr.mxu0 0.0
    %1236 = vmatpush2.msra.mxu0 0.0
    %1237 = vmatprep.subr.mxu0 0.0
    %1238 = vmatpush2.msra.mxu0 0.0
    %1239 = vmatprep.subr.mxu0 0.0
    %1240 = vmatpush2.msra.mxu0 0.0
    %1241 = vmatprep.subr.mxu0 0.0
    %1242 = vmatpush2.msra.mxu0 0.0
    %1243 = vmatprep.subr.mxu0 0.0
    %1244 = vmatpush2.msra.mxu0 0.0
    %1245 = vmatprep.mubr.f32.mxu0 0.0
    %1246 = vmatmul.mubr.f32.gmra.mxu0 %v1180
    %v1247 = vpop.f32.mrf.mxu0
    %v1248 = vadd.f32 %v304, %v1247
    %v1249 = vpop.f32.mrf.mxu0
    %v1250 = vadd.f32 %v308, %v1249
    %1251 = vdwg.mxu0
    %1252 = vmatprep.subr.mxu0 0.0
    %1253 = vmatpush1.msra.mxu0 %v298
    %1254 = vmatprep.subr.mxu0 0.0
    %1255 = vmatpush1.msra.mxu0 %v295
    %1256 = vmatprep.subr.mxu0 0.0
    %1257 = vmatpush1.msra.mxu0 %v292
    %1258 = vmatprep.subr.mxu0 0.0
    %1259 = vmatpush1.msra.mxu0 %v289
    %1260 = vmatprep.subr.mxu0 0.0
    %1261 = vmatpush1.msra.mxu0 %v286
    %1262 = vmatprep.subr.mxu0 0.0
    %1263 = vmatpush1.msra.mxu0 %v283
    %1264 = vmatprep.subr.mxu0 0.0
    %1265 = vmatpush1.msra.mxu0 %v280
    %1266 = vmatprep.subr.mxu0 0.0
    %1267 = vmatpush1.msra.mxu0 %v277
    %1268 = vmatprep.subr.mxu0 0.0
    %1269 = vmatpush1.msra.mxu0 %v274
    %1270 = vmatprep.subr.mxu0 0.0
    %1271 = vmatpush1.msra.mxu0 %v271
    %1272 = vmatprep.subr.mxu0 0.0
    %1273 = vmatpush1.msra.mxu0 %v268
    %1274 = vmatprep.subr.mxu0 0.0
    %1275 = vmatpush1.msra.mxu0 %v265
    %1276 = vmatprep.subr.mxu0 0.0
    %1277 = vmatpush1.msra.mxu0 %v262
    %1278 = vmatprep.subr.mxu0 0.0
    %1279 = vmatpush1.msra.mxu0 %v259
    %1280 = vmatprep.subr.mxu0 0.0
    %1281 = vmatpush1.msra.mxu0 %v256
    %1282 = vmatprep.subr.mxu0 0.0
    %1283 = vmatpush1.msra.mxu0 %v253
    %1284 = vmatprep.subr.mxu0 0.0
    %1285 = vmatpush2.msra.mxu0 0.0
    %1286 = vmatprep.subr.mxu0 0.0
    %1287 = vmatpush2.msra.mxu0 0.0
    %1288 = vmatprep.subr.mxu0 0.0
    %1289 = vmatpush2.msra.mxu0 0.0
    %1290 = vmatprep.subr.mxu0 0.0
    %1291 = vmatpush2.msra.mxu0 0.0
    %1292 = vmatprep.subr.mxu0 0.0
    %1293 = vmatpush2.msra.mxu0 0.0
    %1294 = vmatprep.subr.mxu0 0.0
    %1295 = vmatpush2.msra.mxu0 0.0
    %1296 = vmatprep.subr.mxu0 0.0
    %1297 = vmatpush2.msra.mxu0 0.0
    %1298 = vmatprep.subr.mxu0 0.0
    %1299 = vmatpush2.msra.mxu0 0.0
    %1300 = vmatprep.subr.mxu0 0.0
    %1301 = vmatpush2.msra.mxu0 0.0
    %1302 = vmatprep.subr.mxu0 0.0
    %1303 = vmatpush2.msra.mxu0 0.0
    %1304 = vmatprep.subr.mxu0 0.0
    %1305 = vmatpush2.msra.mxu0 0.0
    %1306 = vmatprep.subr.mxu0 0.0
    %1307 = vmatpush2.msra.mxu0 0.0
    %1308 = vmatprep.subr.mxu0 0.0
    %1309 = vmatpush2.msra.mxu0 0.0
    %1310 = vmatprep.subr.mxu0 0.0
    %1311 = vmatpush2.msra.mxu0 0.0
    %1312 = vmatprep.subr.mxu0 0.0
    %1313 = vmatpush2.msra.mxu0 0.0
    %1314 = vmatprep.subr.mxu0 0.0
    %1315 = vmatpush2.msra.mxu0 0.0
    %1316 = vmatprep.mubr.f32.mxu0 0.0
    %1317 = vmatmul.mubr.f32.gmra.mxu0 %v1180
    %v1318 = vpop.f32.mrf.mxu0
    %v1319 = vadd.f32 %v312, %v1318
    %v1320 = vpop.f32.mrf.mxu0
    %1321 = vdwg.mxu0
    %v1324 = vrot.slane %v1248, 6
    %v1325 = vrot.slane %v1250, 6
    %v1328 = vadd.f32 %v172, %v1324
    %v1329 = vadd.f32 %v174, %v1325
    %v1330 = vxor.u32 %v1328, 2147483648
    %v1331 = vxor.u32 %v1329, 2147483648
    %v1332 = vmul.f32 %v1330, 1.442695
    %v1333 = vpow.pop %v1332
    %v1334 = vmul.f32 %v1331, 1.442695
    %v1335 = vpow.pop %v1334
    %v1336 = vadd.f32 %v1333, 1.0
    %v1337 = vadd.f32 %v1335, 1.0
    %v1338 = vrcp.pop %v1336
    %v1339 = vmul.f32 1.0, %v1338
    %v1340 = vrcp.pop %v1337
    %v1341 = vmul.f32 1.0, %v1340
    %v1343 = vrot.slane %v1319, 6
    %v1345 = vmul.f32 %v1339, %v1343
    %v1346 = vadd.f32 %v248, %v1345
    %v1347 = vtanh.pop %v1346
    %v1349 = vrot.slane %v1347, 2
    %v1351 = vsub.f32 %v1180, %v1349
    %v1353 = vrot.slane %v1351, 6
    %v1355 = vmul.f32 %v1341, %v1353
    %v1356 = vadd.f32 %v1347, %v1355
    %v1358 = vrot.slane %v1356, 2
    %1360 = vmatprep.subr.mxu0 %v297
    %1361 = vmatpush1.msra.mxu0 %v296
    %1362 = vmatprep.subr.mxu0 %v294
    %1363 = vmatpush1.msra.mxu0 %v293
    %1364 = vmatprep.subr.mxu0 %v291
    %1365 = vmatpush1.msra.mxu0 %v290
    %1366 = vmatprep.subr.mxu0 %v288
    %1367 = vmatpush1.msra.mxu0 %v287
    %1368 = vmatprep.subr.mxu0 %v285
    %1369 = vmatpush1.msra.mxu0 %v284
    %1370 = vmatprep.subr.mxu0 %v282
    %1371 = vmatpush1.msra.mxu0 %v281
    %1372 = vmatprep.subr.mxu0 %v279
    %1373 = vmatpush1.msra.mxu0 %v278
    %1374 = vmatprep.subr.mxu0 %v276
    %1375 = vmatpush1.msra.mxu0 %v275
    %1376 = vmatprep.subr.mxu0 %v273
    %1377 = vmatpush1.msra.mxu0 %v272
    %1378 = vmatprep.subr.mxu0 %v270
    %1379 = vmatpush1.msra.mxu0 %v269
    %1380 = vmatprep.subr.mxu0 %v267
    %1381 = vmatpush1.msra.mxu0 %v266
    %1382 = vmatprep.subr.mxu0 %v264
    %1383 = vmatpush1.msra.mxu0 %v263
    %1384 = vmatprep.subr.mxu0 %v261
    %1385 = vmatpush1.msra.mxu0 %v260
    %1386 = vmatprep.subr.mxu0 %v258
    %1387 = vmatpush1.msra.mxu0 %v257
    %1388 = vmatprep.subr.mxu0 %v255
    %1389 = vmatpush1.msra.mxu0 %v254
    %1390 = vmatprep.subr.mxu0 %v252
    %1391 = vmatpush1.msra.mxu0 %v251
    %1392 = vmatprep.subr.mxu0 0.0
    %1393 = vmatpush2.msra.mxu0 0.0
    %1394 = vmatprep.subr.mxu0 0.0
    %1395 = vmatpush2.msra.mxu0 0.0
    %1396 = vmatprep.subr.mxu0 0.0
    %1397 = vmatpush2.msra.mxu0 0.0
    %1398 = vmatprep.subr.mxu0 0.0
    %1399 = vmatpush2.msra.mxu0 0.0
    %1400 = vmatprep.subr.mxu0 0.0
    %1401 = vmatpush2.msra.mxu0 0.0
    %1402 = vmatprep.subr.mxu0 0.0
    %1403 = vmatpush2.msra.mxu0 0.0
    %1404 = vmatprep.subr.mxu0 0.0
    %1405 = vmatpush2.msra.mxu0 0.0
    %1406 = vmatprep.subr.mxu0 0.0
    %1407 = vmatpush2.msra.mxu0 0.0
    %1408 = vmatprep.subr.mxu0 0.0
    %1409 = vmatpush2.msra.mxu0 0.0
    %1410 = vmatprep.subr.mxu0 0.0
    %1411 = vmatpush2.msra.mxu0 0.0
    %1412 = vmatprep.subr.mxu0 0.0
    %1413 = vmatpush2.msra.mxu0 0.0
    %1414 = vmatprep.subr.mxu0 0.0
    %1415 = vmatpush2.msra.mxu0 0.0
    %1416 = vmatprep.subr.mxu0 0.0
    %1417 = vmatpush2.msra.mxu0 0.0
    %1418 = vmatprep.subr.mxu0 0.0
    %1419 = vmatpush2.msra.mxu0 0.0
    %1420 = vmatprep.subr.mxu0 0.0
    %1421 = vmatpush2.msra.mxu0 0.0
    %1422 = vmatprep.subr.mxu0 0.0
    %1423 = vmatpush2.msra.mxu0 0.0
    %1424 = vmatprep.mubr.f32.mxu0 0.0
    %1425 = vmatmul.mubr.f32.gmra.mxu0 %v1358
    %v1426 = vpop.f32.mrf.mxu0
    %v1427 = vadd.f32 %v304, %v1426
    %v1428 = vpop.f32.mrf.mxu0
    %v1429 = vadd.f32 %v308, %v1428
    %1430 = vdwg.mxu0
    %1431 = vmatprep.subr.mxu0 0.0
    %1432 = vmatpush1.msra.mxu0 %v298
    %1433 = vmatprep.subr.mxu0 0.0
    %1434 = vmatpush1.msra.mxu0 %v295
    %1435 = vmatprep.subr.mxu0 0.0
    %1436 = vmatpush1.msra.mxu0 %v292
    %1437 = vmatprep.subr.mxu0 0.0
    %1438 = vmatpush1.msra.mxu0 %v289
    %1439 = vmatprep.subr.mxu0 0.0
    %1440 = vmatpush1.msra.mxu0 %v286
    %1441 = vmatprep.subr.mxu0 0.0
    %1442 = vmatpush1.msra.mxu0 %v283
    %1443 = vmatprep.subr.mxu0 0.0
    %1444 = vmatpush1.msra.mxu0 %v280
    %1445 = vmatprep.subr.mxu0 0.0
    %1446 = vmatpush1.msra.mxu0 %v277
    %1447 = vmatprep.subr.mxu0 0.0
    %1448 = vmatpush1.msra.mxu0 %v274
    %1449 = vmatprep.subr.mxu0 0.0
    %1450 = vmatpush1.msra.mxu0 %v271
    %1451 = vmatprep.subr.mxu0 0.0
    %1452 = vmatpush1.msra.mxu0 %v268
    %1453 = vmatprep.subr.mxu0 0.0
    %1454 = vmatpush1.msra.mxu0 %v265
    %1455 = vmatprep.subr.mxu0 0.0
    %1456 = vmatpush1.msra.mxu0 %v262
    %1457 = vmatprep.subr.mxu0 0.0
    %1458 = vmatpush1.msra.mxu0 %v259
    %1459 = vmatprep.subr.mxu0 0.0
    %1460 = vmatpush1.msra.mxu0 %v256
    %1461 = vmatprep.subr.mxu0 0.0
    %1462 = vmatpush1.msra.mxu0 %v253
    %1463 = vmatprep.subr.mxu0 0.0
    %1464 = vmatpush2.msra.mxu0 0.0
    %1465 = vmatprep.subr.mxu0 0.0
    %1466 = vmatpush2.msra.mxu0 0.0
    %1467 = vmatprep.subr.mxu0 0.0
    %1468 = vmatpush2.msra.mxu0 0.0
    %1469 = vmatprep.subr.mxu0 0.0
    %1470 = vmatpush2.msra.mxu0 0.0
    %1471 = vmatprep.subr.mxu0 0.0
    %1472 = vmatpush2.msra.mxu0 0.0
    %1473 = vmatprep.subr.mxu0 0.0
    %1474 = vmatpush2.msra.mxu0 0.0
    %1475 = vmatprep.subr.mxu0 0.0
    %1476 = vmatpush2.msra.mxu0 0.0
    %1477 = vmatprep.subr.mxu0 0.0
    %1478 = vmatpush2.msra.mxu0 0.0
    %1479 = vmatprep.subr.mxu0 0.0
    %1480 = vmatpush2.msra.mxu0 0.0
    %1481 = vmatprep.subr.mxu0 0.0
    %1482 = vmatpush2.msra.mxu0 0.0
    %1483 = vmatprep.subr.mxu0 0.0
    %1484 = vmatpush2.msra.mxu0 0.0
    %1485 = vmatprep.subr.mxu0 0.0
    %1486 = vmatpush2.msra.mxu0 0.0
    %1487 = vmatprep.subr.mxu0 0.0
    %1488 = vmatpush2.msra.mxu0 0.0
    %1489 = vmatprep.subr.mxu0 0.0
    %1490 = vmatpush2.msra.mxu0 0.0
    %1491 = vmatprep.subr.mxu0 0.0
    %1492 = vmatpush2.msra.mxu0 0.0
    %1493 = vmatprep.subr.mxu0 0.0
    %1494 = vmatpush2.msra.mxu0 0.0
    %1495 = vmatprep.mubr.f32.mxu0 0.0
    %1496 = vmatmul.mubr.f32.gmra.mxu0 %v1358
    %v1497 = vpop.f32.mrf.mxu0
    %v1498 = vadd.f32 %v312, %v1497
    %v1499 = vpop.f32.mrf.mxu0
    %1500 = vdwg.mxu0
    %v1503 = vrot.slane %v1427, 4
    %v1504 = vrot.slane %v1429, 4
    %v1507 = vadd.f32 %v172, %v1503
    %v1508 = vadd.f32 %v174, %v1504
    %v1509 = vxor.u32 %v1507, 2147483648
    %v1510 = vxor.u32 %v1508, 2147483648
    %v1511 = vmul.f32 %v1509, 1.442695
    %v1512 = vpow.pop %v1511
    %v1513 = vmul.f32 %v1510, 1.442695
    %v1514 = vpow.pop %v1513
    %v1515 = vadd.f32 %v1512, 1.0
    %v1516 = vadd.f32 %v1514, 1.0
    %v1517 = vrcp.pop %v1515
    %v1518 = vmul.f32 1.0, %v1517
    %v1519 = vrcp.pop %v1516
    %v1520 = vmul.f32 1.0, %v1519
    %v1522 = vrot.slane %v1498, 4
    %v1524 = vmul.f32 %v1518, %v1522
    %v1525 = vadd.f32 %v248, %v1524
    %v1526 = vtanh.pop %v1525
    %v1528 = vrot.slane %v1526, 2
    %v1530 = vsub.f32 %v1356, %v1528
    %v1532 = vrot.slane %v1530, 6
    %v1534 = vmul.f32 %v1520, %v1532
    %v1535 = vadd.f32 %v1526, %v1534
    %v1537 = vrot.slane %v1535, 4
    %1539 = vmatprep.subr.mxu0 %v297
    %1540 = vmatpush1.msra.mxu0 %v296
    %1541 = vmatprep.subr.mxu0 %v294
    %1542 = vmatpush1.msra.mxu0 %v293
    %1543 = vmatprep.subr.mxu0 %v291
    %1544 = vmatpush1.msra.mxu0 %v290
    %1545 = vmatprep.subr.mxu0 %v288
    %1546 = vmatpush1.msra.mxu0 %v287
    %1547 = vmatprep.subr.mxu0 %v285
    %1548 = vmatpush1.msra.mxu0 %v284
    %1549 = vmatprep.subr.mxu0 %v282
    %1550 = vmatpush1.msra.mxu0 %v281
    %1551 = vmatprep.subr.mxu0 %v279
    %1552 = vmatpush1.msra.mxu0 %v278
    %1553 = vmatprep.subr.mxu0 %v276
    %1554 = vmatpush1.msra.mxu0 %v275
    %1555 = vmatprep.subr.mxu0 %v273
    %1556 = vmatpush1.msra.mxu0 %v272
    %1557 = vmatprep.subr.mxu0 %v270
    %1558 = vmatpush1.msra.mxu0 %v269
    %1559 = vmatprep.subr.mxu0 %v267
    %1560 = vmatpush1.msra.mxu0 %v266
    %1561 = vmatprep.subr.mxu0 %v264
    %1562 = vmatpush1.msra.mxu0 %v263
    %1563 = vmatprep.subr.mxu0 %v261
    %1564 = vmatpush1.msra.mxu0 %v260
    %1565 = vmatprep.subr.mxu0 %v258
    %1566 = vmatpush1.msra.mxu0 %v257
    %1567 = vmatprep.subr.mxu0 %v255
    %1568 = vmatpush1.msra.mxu0 %v254
    %1569 = vmatprep.subr.mxu0 %v252
    %1570 = vmatpush1.msra.mxu0 %v251
    %1571 = vmatprep.subr.mxu0 0.0
    %1572 = vmatpush2.msra.mxu0 0.0
    %1573 = vmatprep.subr.mxu0 0.0
    %1574 = vmatpush2.msra.mxu0 0.0
    %1575 = vmatprep.subr.mxu0 0.0
    %1576 = vmatpush2.msra.mxu0 0.0
    %1577 = vmatprep.subr.mxu0 0.0
    %1578 = vmatpush2.msra.mxu0 0.0
    %1579 = vmatprep.subr.mxu0 0.0
    %1580 = vmatpush2.msra.mxu0 0.0
    %1581 = vmatprep.subr.mxu0 0.0
    %1582 = vmatpush2.msra.mxu0 0.0
    %1583 = vmatprep.subr.mxu0 0.0
    %1584 = vmatpush2.msra.mxu0 0.0
    %1585 = vmatprep.subr.mxu0 0.0
    %1586 = vmatpush2.msra.mxu0 0.0
    %1587 = vmatprep.subr.mxu0 0.0
    %1588 = vmatpush2.msra.mxu0 0.0
    %1589 = vmatprep.subr.mxu0 0.0
    %1590 = vmatpush2.msra.mxu0 0.0
    %1591 = vmatprep.subr.mxu0 0.0
    %1592 = vmatpush2.msra.mxu0 0.0
    %1593 = vmatprep.subr.mxu0 0.0
    %1594 = vmatpush2.msra.mxu0 0.0
    %1595 = vmatprep.subr.mxu0 0.0
    %1596 = vmatpush2.msra.mxu0 0.0
    %1597 = vmatprep.subr.mxu0 0.0
    %1598 = vmatpush2.msra.mxu0 0.0
    %1599 = vmatprep.subr.mxu0 0.0
    %1600 = vmatpush2.msra.mxu0 0.0
    %1601 = vmatprep.subr.mxu0 0.0
    %1602 = vmatpush2.msra.mxu0 0.0
    %1603 = vmatprep.mubr.f32.mxu0 0.0
    %1604 = vmatmul.mubr.f32.gmra.mxu0 %v1537
    %v1605 = vpop.f32.mrf.mxu0
    %v1606 = vadd.f32 %v304, %v1605
    %v1607 = vpop.f32.mrf.mxu0
    %v1608 = vadd.f32 %v308, %v1607
    %1609 = vdwg.mxu0
    %1610 = vmatprep.subr.mxu0 0.0
    %1611 = vmatpush1.msra.mxu0 %v298
    %1612 = vmatprep.subr.mxu0 0.0
    %1613 = vmatpush1.msra.mxu0 %v295
    %1614 = vmatprep.subr.mxu0 0.0
    %1615 = vmatpush1.msra.mxu0 %v292
    %1616 = vmatprep.subr.mxu0 0.0
    %1617 = vmatpush1.msra.mxu0 %v289
    %1618 = vmatprep.subr.mxu0 0.0
    %1619 = vmatpush1.msra.mxu0 %v286
    %1620 = vmatprep.subr.mxu0 0.0
    %1621 = vmatpush1.msra.mxu0 %v283
    %1622 = vmatprep.subr.mxu0 0.0
    %1623 = vmatpush1.msra.mxu0 %v280
    %1624 = vmatprep.subr.mxu0 0.0
    %1625 = vmatpush1.msra.mxu0 %v277
    %1626 = vmatprep.subr.mxu0 0.0
    %1627 = vmatpush1.msra.mxu0 %v274
    %1628 = vmatprep.subr.mxu0 0.0
    %1629 = vmatpush1.msra.mxu0 %v271
    %1630 = vmatprep.subr.mxu0 0.0
    %1631 = vmatpush1.msra.mxu0 %v268
    %1632 = vmatprep.subr.mxu0 0.0
    %1633 = vmatpush1.msra.mxu0 %v265
    %1634 = vmatprep.subr.mxu0 0.0
    %1635 = vmatpush1.msra.mxu0 %v262
    %1636 = vmatprep.subr.mxu0 0.0
    %1637 = vmatpush1.msra.mxu0 %v259
    %1638 = vmatprep.subr.mxu0 0.0
    %1639 = vmatpush1.msra.mxu0 %v256
    %1640 = vmatprep.subr.mxu0 0.0
    %1641 = vmatpush1.msra.mxu0 %v253
    %1642 = vmatprep.subr.mxu0 0.0
    %1643 = vmatpush2.msra.mxu0 0.0
    %1644 = vmatprep.subr.mxu0 0.0
    %1645 = vmatpush2.msra.mxu0 0.0
    %1646 = vmatprep.subr.mxu0 0.0
    %1647 = vmatpush2.msra.mxu0 0.0
    %1648 = vmatprep.subr.mxu0 0.0
    %1649 = vmatpush2.msra.mxu0 0.0
    %1650 = vmatprep.subr.mxu0 0.0
    %1651 = vmatpush2.msra.mxu0 0.0
    %1652 = vmatprep.subr.mxu0 0.0
    %1653 = vmatpush2.msra.mxu0 0.0
    %1654 = vmatprep.subr.mxu0 0.0
    %1655 = vmatpush2.msra.mxu0 0.0
    %1656 = vmatprep.subr.mxu0 0.0
    %1657 = vmatpush2.msra.mxu0 0.0
    %1658 = vmatprep.subr.mxu0 0.0
    %1659 = vmatpush2.msra.mxu0 0.0
    %1660 = vmatprep.subr.mxu0 0.0
    %1661 = vmatpush2.msra.mxu0 0.0
    %1662 = vmatprep.subr.mxu0 0.0
    %1663 = vmatpush2.msra.mxu0 0.0
    %1664 = vmatprep.subr.mxu0 0.0
    %1665 = vmatpush2.msra.mxu0 0.0
    %1666 = vmatprep.subr.mxu0 0.0
    %1667 = vmatpush2.msra.mxu0 0.0
    %1668 = vmatprep.subr.mxu0 0.0
    %1669 = vmatpush2.msra.mxu0 0.0
    %1670 = vmatprep.subr.mxu0 0.0
    %1671 = vmatpush2.msra.mxu0 0.0
    %1672 = vmatprep.subr.mxu0 0.0
    %1673 = vmatpush2.msra.mxu0 0.0
    %1674 = vmatprep.mubr.f32.mxu0 0.0
    %1675 = vmatmul.mubr.f32.gmra.mxu0 %v1537
    %v1676 = vpop.f32.mrf.mxu0
    %v1677 = vadd.f32 %v312, %v1676
    %v1678 = vpop.f32.mrf.mxu0
    %1679 = vdwg.mxu0
    %v1682 = vrot.slane %v1606, 2
    %v1683 = vrot.slane %v1608, 2
    %v1686 = vadd.f32 %v172, %v1682
    %v1687 = vadd.f32 %v174, %v1683
    %v1688 = vxor.u32 %v1686, 2147483648
    %v1689 = vxor.u32 %v1687, 2147483648
    %v1690 = vmul.f32 %v1688, 1.442695
    %v1691 = vpow.pop %v1690
    %v1692 = vmul.f32 %v1689, 1.442695
    %v1693 = vpow.pop %v1692
    %v1694 = vadd.f32 %v1691, 1.0
    %v1695 = vadd.f32 %v1693, 1.0
    %v1696 = vrcp.pop %v1694
    %v1697 = vmul.f32 1.0, %v1696
    %v1698 = vrcp.pop %v1695
    %v1699 = vmul.f32 1.0, %v1698
    %v1701 = vrot.slane %v1677, 2
    %v1703 = vmul.f32 %v1697, %v1701
    %v1704 = vadd.f32 %v248, %v1703
    %v1705 = vtanh.pop %v1704
    %v1707 = vrot.slane %v1705, 2
    %v1709 = vsub.f32 %v1535, %v1707
    %v1711 = vrot.slane %v1709, 6
    %v1713 = vmul.f32 %v1699, %v1711
    %v1714 = vadd.f32 %v1705, %v1713
    %v1715 = vld [vmem:[%s5] sm:$0xff]
    %v1716 = vld [vmem:[%s5 + $0x8] sm:$0xff]
    %v1717 = vld [vmem:[%s5 + $0x10] sm:$0xff]
    %v1718 = vld [vmem:[%s5 + $0x18] sm:$0xff]
    %v1719 = vld [vmem:[%s5 + $0x20] sm:$0xff]
    %v1720 = vld [vmem:[%s5 + $0x28] sm:$0xff]
    %v1721 = vld [vmem:[%s5 + $0x30] sm:$0xff]
    %v1722 = vld [vmem:[%s5 + $0x38] sm:$0xff]
    %v1723 = vld [vmem:[%s5 + $0x40] sm:$0xff]
    %v1724 = vld [vmem:[%s5 + $0x48] sm:$0xff]
    %v1725 = vld [vmem:[%s5 + $0x50] sm:$0xff]
    %v1726 = vld [vmem:[%s5 + $0x58] sm:$0xff]
    %v1727 = vld [vmem:[%s5 + $0x60] sm:$0xff]
    %v1728 = vld [vmem:[%s5 + $0x68] sm:$0xff]
    %v1729 = vld [vmem:[%s5 + $0x70] sm:$0xff]
    %v1730 = vld [vmem:[%s5 + $0x78] sm:$0xff]
    %v1731 = vld [vmem:[%s6] sm:$0x1]
    %v1733 = vlaneseq
    %v1734 = vshrl.u32 %v1733, 7
    %v1735 = vsub.s32 0, %v1734
    %v1736 = vrot.slane %v1731, %v1735
    %v1739 = vrot.slane %v1714, 6
    %1741 = vmatprep.subr.mxu0 0.0
    %1742 = vmatpush1.msra.mxu0 %v1730
    %1743 = vmatprep.subr.mxu0 0.0
    %1744 = vmatpush1.msra.mxu0 %v1729
    %1745 = vmatprep.subr.mxu0 0.0
    %1746 = vmatpush1.msra.mxu0 %v1728
    %1747 = vmatprep.subr.mxu0 0.0
    %1748 = vmatpush1.msra.mxu0 %v1727
    %1749 = vmatprep.subr.mxu0 0.0
    %1750 = vmatpush1.msra.mxu0 %v1726
    %1751 = vmatprep.subr.mxu0 0.0
    %1752 = vmatpush1.msra.mxu0 %v1725
    %1753 = vmatprep.subr.mxu0 0.0
    %1754 = vmatpush1.msra.mxu0 %v1724
    %1755 = vmatprep.subr.mxu0 0.0
    %1756 = vmatpush1.msra.mxu0 %v1723
    %1757 = vmatprep.subr.mxu0 0.0
    %1758 = vmatpush1.msra.mxu0 %v1722
    %1759 = vmatprep.subr.mxu0 0.0
    %1760 = vmatpush1.msra.mxu0 %v1721
    %1761 = vmatprep.subr.mxu0 0.0
    %1762 = vmatpush1.msra.mxu0 %v1720
    %1763 = vmatprep.subr.mxu0 0.0
    %1764 = vmatpush1.msra.mxu0 %v1719
    %1765 = vmatprep.subr.mxu0 0.0
    %1766 = vmatpush1.msra.mxu0 %v1718
    %1767 = vmatprep.subr.mxu0 0.0
    %1768 = vmatpush1.msra.mxu0 %v1717
    %1769 = vmatprep.subr.mxu0 0.0
    %1770 = vmatpush1.msra.mxu0 %v1716
    %1771 = vmatprep.subr.mxu0 0.0
    %1772 = vmatpush1.msra.mxu0 %v1715
    %1773 = vmatprep.subr.mxu0 0.0
    %1774 = vmatpush2.msra.mxu0 0.0
    %1775 = vmatprep.subr.mxu0 0.0
    %1776 = vmatpush2.msra.mxu0 0.0
    %1777 = vmatprep.subr.mxu0 0.0
    %1778 = vmatpush2.msra.mxu0 0.0
    %1779 = vmatprep.subr.mxu0 0.0
    %1780 = vmatpush2.msra.mxu0 0.0
    %1781 = vmatprep.subr.mxu0 0.0
    %1782 = vmatpush2.msra.mxu0 0.0
    %1783 = vmatprep.subr.mxu0 0.0
    %1784 = vmatpush2.msra.mxu0 0.0
    %1785 = vmatprep.subr.mxu0 0.0
    %1786 = vmatpush2.msra.mxu0 0.0
    %1787 = vmatprep.subr.mxu0 0.0
    %1788 = vmatpush2.msra.mxu0 0.0
    %1789 = vmatprep.subr.mxu0 0.0
    %1790 = vmatpush2.msra.mxu0 0.0
    %1791 = vmatprep.subr.mxu0 0.0
    %1792 = vmatpush2.msra.mxu0 0.0
    %1793 = vmatprep.subr.mxu0 0.0
    %1794 = vmatpush2.msra.mxu0 0.0
    %1795 = vmatprep.subr.mxu0 0.0
    %1796 = vmatpush2.msra.mxu0 0.0
    %1797 = vmatprep.subr.mxu0 0.0
    %1798 = vmatpush2.msra.mxu0 0.0
    %1799 = vmatprep.subr.mxu0 0.0
    %1800 = vmatpush2.msra.mxu0 0.0
    %1801 = vmatprep.subr.mxu0 0.0
    %1802 = vmatpush2.msra.mxu0 0.0
    %1803 = vmatprep.subr.mxu0 0.0
    %1804 = vmatpush2.msra.mxu0 0.0
    %1805 = vmatprep.mubr.f32.mxu0 0.0
    %1806 = vmatmul.mubr.f32.gmra.mxu0 %v1739
    %v1807 = vpop.f32.mrf.mxu0
    %v1808 = vadd.f32 %v1736, %v1807
    %v1809 = vpop.f32.mrf.mxu0
    %1810 = vdwg.mxu0
    %s1811 = sld [smem:[#allocation2]]
    %v1812 = vstv %s1811
    %v1813 = vadd.f32 %v1808, %v1812
    %s1814 = sld [smem:[#allocation7]]
    %v1815 = vstv %s1814
    %v1816 = vmul.f32 %v1815, %v62
    %v1817 = vadd.f32 %v1813, %v1816
    %s1818 = sld [smem:[#allocation7 + $0x1]]
    %v1819 = vstv %s1818
    %v1820 = vmul.f32 %v1819, %v62
    %v1822 = vrot.slane %v1820, 2
    %v1824 = vadd.f32 %v1817, %v1822
    %s1825 = sld [smem:[#allocation7 + $0x2]]
    %v1826 = vstv %s1825
    %v1827 = vmul.f32 %v1826, %v62
    %v1829 = vrot.slane %v1827, 4
    %v1831 = vadd.f32 %v1824, %v1829
    %s1832 = sld [smem:[#allocation7 + $0x3]]
    %v1833 = vstv %s1832
    %v1834 = vmul.f32 %v1833, %v62
    %v1836 = vrot.slane %v1834, 6
    %v1838 = vadd.f32 %v1831, %v1836
    %v1839 = vxor.u32 %v1838, 2147483648
    %v1840 = vmul.f32 %v1839, 1.442695
    %v1841 = vpow.pop %v1840
    %v1842 = vadd.f32 %v1841, 1.0
    %v1843 = vrcp.pop %v1842
    %v1844 = vmul.f32 1.0, %v1843
    %vm1845 = vcmask 25600
    %1846 = vst.msk [vmem:[#allocation8] sm:$0x3] %vm1845, %v1844
    // Predicated region
    $region46: #{tpu_custom_call.1} parent=1 // pred_check
      _
    $region47: #{tpu_custom_call.1} parent=1 // pred_check_branch
      %1848 = sbr.rel (0) target = $region49
    $region48: #{tpu_custom_call.1} parent=1 // pred_region
      %s1850 = ssub.s32 32, 32
      %1851 = vsyncadd [#allocation5], %s1850
      %s1853 = sshll.u32 [#allocation8], 4
      %s1854 = int_to_ptr.vmem [resolvable:$true] %s1853
      %1856 = dma.vmem_to_hbm [thread:$0]  %s1854, 32, %s9, [#allocation5]
    $region49: #{tpu_custom_call.1} parent=1 // pred_fallthru
      _
    // Predicated region
    $region50: #{tpu_custom_call.1} parent=1 // pred_check
      _
    $region51: #{tpu_custom_call.1} parent=1 // pred_check_branch
      %1858 = sbr.rel (0) target = $region53
    $region52: #{tpu_custom_call.1} parent=1 // pred_region
      %1859 = dma.done [#allocation5], 32
    $region53: #{tpu_custom_call.1} parent=1 // pred_fallthru
      _
    %1860 = vsyncpa [#allocation4], 1
    %1861 = vsyncpa [#allocation5], 1
    %1862 = vsyncpa [#allocation6], 1

</llo_original>
